<compile_context>
chip_gen: v6e
topology: v6e:2x2x1
jax: 0.10.0
libtpu: 0.0.40
codegen_flags: <defaults>
</compile_context>

<pallas_src>
import functools

import jax
import jax.numpy as jnp
from jax.experimental import pallas as pl
from jax.experimental.pallas import tpu as pltpu

LANE = 128   # lane width / feature padding
TM = 128     # output-row tile (nodes)
TK = 128     # reduction tile over neighbor nodes (columns of A_hat)


def _round_up(x, m):
    return (x + m - 1) // m * m


def _pad2(x, rows, cols, dtype):
    """Zero-pad a 2-D array to (rows, cols) and cast."""
    out = jnp.zeros((rows, cols), dtype)
    return out.at[: x.shape[0], : x.shape[1]].set(x.astype(dtype))


# ----------------------------------------------------------------------------
# Kernels
# ----------------------------------------------------------------------------
def gcn_layer_kernel(a_ref, x_ref, w_ref, b_ref, gamma_ref, beta_ref, mask_ref,
                     o_ref, acc_ref, *, inv_keep, use_dropout, real_f):
    """One intermediate GCN layer: aggregate + linear + ReLU + dropout + LayerNorm."""
    k = pl.program_id(1)

    @pl.when(k == 0)
    def _():
        acc_ref[...] = jnp.zeros_like(acc_ref)

    # Accumulate the neighborhood aggregation (A_hat row-tile) @ (X k-tile) on the MXU.
    acc_ref[...] += jnp.dot(a_ref[...], x_ref[...], preferred_element_type=jnp.float32)

    @pl.when(k == pl.num_programs(1) - 1)
    def _():
        # Linear:  (A_hat @ X) @ W + b   (== A_hat @ (X @ W) + b)
        h = jnp.dot(acc_ref[...].astype(jnp.bfloat16), w_ref[...],
                    preferred_element_type=jnp.float32) + b_ref[...]
        h = jnp.maximum(h, 0.0)                                   # ReLU
        if use_dropout:                                           # F.dropout semantics
            h = h * mask_ref[...].astype(jnp.float32) * inv_keep
        # LayerNorm over the real feature width (padded lanes are exactly zero),
        # one-pass variance E[x^2] - mean^2.
        s1 = jnp.sum(h, axis=-1, keepdims=True)
        s2 = jnp.sum(h * h, axis=-1, keepdims=True)
        mean = s1 * (1.0 / real_f)
        var = s2 * (1.0 / real_f) - mean * mean
        hn = (h - mean) * jax.lax.rsqrt(var + 1e-5)
        hn = hn * gamma_ref[...] + beta_ref[...]                  # padded gamma/beta = 0
        o_ref[...] = hn.astype(o_ref.dtype)


def gcn_final_kernel(a_ref, x_ref, w_ref, b_ref, mask1_ref,
                     w1_ref, b1_ref, w2_ref, b2_ref, mask2_ref,
                     o_ref, acc_ref, *, inv_keep, use_dropout):
    """Last GCN layer (no LayerNorm) fused with post_mp: Linear->Dropout->Linear->sigmoid."""
    k = pl.program_id(1)

    @pl.when(k == 0)
    def _():
        acc_ref[...] = jnp.zeros_like(acc_ref)

    acc_ref[...] += jnp.dot(a_ref[...], x_ref[...], preferred_element_type=jnp.float32)

    @pl.when(k == pl.num_programs(1) - 1)
    def _():
        h = jnp.dot(acc_ref[...].astype(jnp.bfloat16), w_ref[...],
                    preferred_element_type=jnp.float32) + b_ref[...]
        h = jnp.maximum(h, 0.0)
        if use_dropout:
            h = h * mask1_ref[...].astype(jnp.float32) * inv_keep
        # post_mp on the resident row tile
        h1 = jnp.dot(h.astype(jnp.bfloat16), w1_ref[...],
                     preferred_element_type=jnp.float32) + b1_ref[...]
        if use_dropout:
            h1 = h1 * mask2_ref[...].astype(jnp.float32) * inv_keep
        h2 = jnp.dot(h1.astype(jnp.bfloat16), w2_ref[...],
                     preferred_element_type=jnp.float32) + b2_ref[...]
        o_ref[...] = jax.nn.sigmoid(h2).astype(o_ref.dtype)


# ----------------------------------------------------------------------------
# pallas_call wrappers
# ----------------------------------------------------------------------------
_COMPILER_PARAMS = pltpu.CompilerParams(
    dimension_semantics=("parallel", "arbitrary"),   # rows shard across cores on v7x
    vmem_limit_bytes=32 * 1024 * 1024,               # safe on v5e/v6e/v7x for 128x128 tiles
)


def gcn_layer(a_hat, x, w, b, gamma, beta, mask, *, real_f, dropout_p, training):
    n_pad = a_hat.shape[0]
    f_in = x.shape[1]
    f_out = w.shape[1]
    grid = (n_pad // TM, n_pad // TK)
    use_dropout = bool(training) and dropout_p > 0.0
    kernel = functools.partial(
        gcn_layer_kernel,
        inv_keep=(1.0 / (1.0 - dropout_p)) if use_dropout else 1.0,
        use_dropout=use_dropout, real_f=float(real_f))
    return pl.pallas_call(
        kernel,
        out_shape=jax.ShapeDtypeStruct((n_pad, f_out), jnp.bfloat16),
        grid=grid,
        in_specs=[
            pl.BlockSpec((TM, TK), lambda i, k: (i, k)),        # A_hat tile (bf16)
            pl.BlockSpec((TK, f_in), lambda i, k: (k, 0)),      # X tile (bf16)
            pl.BlockSpec((f_in, f_out), lambda i, k: (0, 0)),   # W (tiny, whole)
            pl.BlockSpec((1, f_out), lambda i, k: (0, 0)),      # bias
            pl.BlockSpec((1, f_out), lambda i, k: (0, 0)),      # LN gamma
            pl.BlockSpec((1, f_out), lambda i, k: (0, 0)),      # LN beta
            pl.BlockSpec((TM, f_out), lambda i, k: (i, 0)),     # dropout keep-mask row tile
        ],
        out_specs=pl.BlockSpec((TM, f_out), lambda i, k: (i, 0)),
        scratch_shapes=[pltpu.VMEM((TM, f_in), jnp.float32)],   # f32 accumulator for A@X
        compiler_params=_COMPILER_PARAMS,
    )(a_hat, x, w, b, gamma, beta, mask)


def gcn_final(a_hat, x, w, b, mask1, w1, b1, w2, b2, mask2, *, dropout_p, training):
    n_pad = a_hat.shape[0]
    f_in = x.shape[1]
    f_h = w.shape[1]
    f_o = w2.shape[1]
    grid = (n_pad // TM, n_pad // TK)
    use_dropout = bool(training) and dropout_p > 0.0
    kernel = functools.partial(
        gcn_final_kernel,
        inv_keep=(1.0 / (1.0 - dropout_p)) if use_dropout else 1.0,
        use_dropout=use_dropout)
    return pl.pallas_call(
        kernel,
        out_shape=jax.ShapeDtypeStruct((n_pad, f_o), jnp.float32),
        grid=grid,
        in_specs=[
            pl.BlockSpec((TM, TK), lambda i, k: (i, k)),        # A_hat tile
            pl.BlockSpec((TK, f_in), lambda i, k: (k, 0)),      # X tile
            pl.BlockSpec((f_in, f_h), lambda i, k: (0, 0)),     # conv W
            pl.BlockSpec((1, f_h), lambda i, k: (0, 0)),        # conv bias
            pl.BlockSpec((TM, f_h), lambda i, k: (i, 0)),       # dropout mask (conv)
            pl.BlockSpec((f_h, f_h), lambda i, k: (0, 0)),      # post_mp W1
            pl.BlockSpec((1, f_h), lambda i, k: (0, 0)),        # post_mp b1
            pl.BlockSpec((f_h, f_o), lambda i, k: (0, 0)),      # post_mp W2
            pl.BlockSpec((1, f_o), lambda i, k: (0, 0)),        # post_mp b2
            pl.BlockSpec((TM, f_h), lambda i, k: (i, 0)),       # dropout mask (post_mp)
        ],
        out_specs=pl.BlockSpec((TM, f_o), lambda i, k: (i, 0)),
        scratch_shapes=[pltpu.VMEM((TM, f_in), jnp.float32)],
        compiler_params=_COMPILER_PARAMS,
    )(a_hat, x, w, b, mask1, w1, b1, w2, b2, mask2)


# ----------------------------------------------------------------------------
# Model glue (params, graph normalization, layer loop) — plain JAX
# ----------------------------------------------------------------------------
def init_params(key, num_layers, input_dim, hidden_dim, output_dim):
    params = {"convs": [], "lns": [], "post": {}}
    dims = [input_dim] + [hidden_dim] * num_layers
    for i in range(num_layers):
        key, kw = jax.random.split(key)
        fan_in, fan_out = dims[i], dims[i + 1]
        w = jax.random.normal(kw, (fan_in, fan_out), jnp.float32) * (2.0 / (fan_in + fan_out)) ** 0.5
        b = jnp.zeros((1, fan_out), jnp.float32)
        params["convs"].append((w, b))
    for _ in range(max(num_layers - 1, 0)):
        params["lns"].append((jnp.ones((1, hidden_dim), jnp.float32),
                              jnp.zeros((1, hidden_dim), jnp.float32)))
    key, k1, k2 = jax.random.split(key, 3)
    params["post"] = {
        "w1": jax.random.normal(k1, (hidden_dim, hidden_dim), jnp.float32) * (1.0 / hidden_dim) ** 0.5,
        "b1": jnp.zeros((1, hidden_dim), jnp.float32),
        "w2": jax.random.normal(k2, (hidden_dim, output_dim), jnp.float32) * (1.0 / hidden_dim) ** 0.5,
        "b2": jnp.zeros((1, output_dim), jnp.float32),
    }
    return params


def gcn_normalize(edge_index, num_nodes):
    """Dense D^-1/2 (A + I) D^-1/2 from a (2, E) edge_index (src, dst)."""
    src, dst = edge_index[0], edge_index[1]
    adj = jnp.zeros((num_nodes, num_nodes), jnp.float32).at[dst, src].set(1.0)
    adj = adj + jnp.eye(num_nodes, dtype=jnp.float32)   # self loops
    deg = jnp.sum(adj, axis=1)
    d_inv_sqrt = jnp.where(deg > 0, 1.0 / jnp.sqrt(deg), 0.0)
    return adj * d_inv_sqrt[:, None] * d_inv_sqrt[None, :]


def gcn_model_forward(params, x, a_hat, *, num_layers, hidden_dim, output_dim,
                      dropout=0.3, training=True, rng=None):
    n, input_dim = x.shape
    n_pad = _round_up(n, max(TM, TK))
    f_in_pad = _round_up(input_dim, LANE)
    f_h_pad = _round_up(hidden_dim, LANE)
    f_o_pad = _round_up(output_dim, LANE)

    a_p = _pad2(a_hat, n_pad, n_pad, jnp.bfloat16)           # streamed once per layer
    h = _pad2(x, n_pad, f_in_pad, jnp.bfloat16)

    if rng is None:
        rng = jax.random.PRNGKey(0)
    keys = jax.random.split(rng, num_layers + 1)
    use_dropout = bool(training) and dropout > 0.0

    def make_mask(key, cols):
        if use_dropout:
            return jax.random.bernoulli(key, 1.0 - dropout, (n_pad, cols)).astype(jnp.bfloat16)
        return jnp.ones((n_pad, cols), jnp.bfloat16)

    # intermediate layers: conv + ReLU + dropout + LayerNorm
    for i in range(num_layers - 1):
        w, b = params["convs"][i]
        gamma, beta = params["lns"][i]
        cur_f_in = h.shape[1]
        w_p = _pad2(w, cur_f_in, f_h_pad, jnp.bfloat16)
        b_p = _pad2(b, 1, f_h_pad, jnp.float32)
        g_p = _pad2(gamma, 1, f_h_pad, jnp.float32)          # pad with zeros -> pad lanes stay 0
        be_p = _pad2(beta, 1, f_h_pad, jnp.float32)
        mask = make_mask(keys[i], f_h_pad)
        h = gcn_layer(a_p, h, w_p, b_p, g_p, be_p, mask,
                      real_f=hidden_dim, dropout_p=dropout, training=training)

    # last layer (no LayerNorm) fused with post_mp + sigmoid
    w, b = params["convs"][num_layers - 1]
    cur_f_in = h.shape[1]
    w_p = _pad2(w, cur_f_in, f_h_pad, jnp.bfloat16)
    b_p = _pad2(b, 1, f_h_pad, jnp.float32)
    p = params["post"]
    w1_p = _pad2(p["w1"], f_h_pad, f_h_pad, jnp.bfloat16)
    b1_p = _pad2(p["b1"], 1, f_h_pad, jnp.float32)
    w2_p = _pad2(p["w2"], f_h_pad, f_o_pad, jnp.bfloat16)
    b2_p = _pad2(p["b2"], 1, f_o_pad, jnp.float32)
    mask1 = make_mask(keys[num_layers - 1], f_h_pad)
    mask2 = make_mask(keys[num_layers], f_h_pad)

    out = gcn_final(a_p, h, w_p, b_p, mask1, w1_p, b1_p, w2_p, b2_p, mask2,
                    dropout_p=dropout, training=training)
    return out[:n, :output_dim]


# ----------------------------------------------------------------------------
if __name__ == "__main__":
    num_layers = 3
    input_dim = 8
    hidden_dim = 32
    output_dim = 4
    num_nodes = 200          # pads to 256 -> 2x2 grid, exercises row + reduction tiling
    dropout = 0.3
    training = True

    key = jax.random.PRNGKey(0)
    key, kx, ke, kd = jax.random.split(key, 4)

    # node features
    x = jax.random.normal(kx, (num_nodes, input_dim), jnp.float32)

    # small random undirected graph as edge_index (2, E)
    mask = jax.random.bernoulli(ke, 0.05, (num_nodes, num_nodes))
    mask = jnp.triu(mask, k=1)
    srcs, dsts = jnp.where(mask)
    edge_index = jnp.stack([jnp.concatenate([srcs, dsts]),
                            jnp.concatenate([dsts, srcs])]).astype(jnp.int32)

    a_hat = gcn_normalize(edge_index, num_nodes)
    params = init_params(key, num_layers, input_dim, hidden_dim, output_dim)

    out = gcn_model_forward(params, x, a_hat, num_layers=num_layers,
                            hidden_dim=hidden_dim, output_dim=output_dim,
                            dropout=dropout, training=training, rng=kd)
    out = jax.block_until_ready(out)

    assert out.shape == (num_nodes, output_dim)
    assert bool(jnp.all(jnp.isfinite(out)))
    assert bool(jnp.all((out >= 0.0) & (out <= 1.0)))   # sigmoid output
    print("KERNEL_OK")
</pallas_src>

<mosaic_0001>
module attributes {stable_mosaic.version = 11 : i64} {
  func.func @gcn_layer_kernel(%arg0: i32, %arg1: i32, %arg2: memref<128x128xbf16, #tpu.memory_space<vmem>>, %arg3: memref<128x128xbf16, #tpu.memory_space<vmem>>, %arg4: memref<128x128xbf16, #tpu.memory_space<vmem>>, %arg5: memref<1x128xf32, #tpu.memory_space<vmem>>, %arg6: memref<1x128xf32, #tpu.memory_space<vmem>>, %arg7: memref<1x128xf32, #tpu.memory_space<vmem>>, %arg8: memref<128x128xbf16, #tpu.memory_space<vmem>>, %arg9: memref<128x128xbf16, #tpu.memory_space<vmem>>, %arg10: memref<128x128xf32, #tpu.memory_space<vmem>>) attributes {dimension_semantics = [#tpu.dimension_semantics<parallel>, #tpu.dimension_semantics<arbitrary>], iteration_bounds = array<i64: 2, 2>, scalar_prefetch = 0 : i64, scratch_operands = 1 : i64, tpu.core_type = #tpu.core_type<tc>, window_params = [{transform_indices = @transform_0, window_bounds = array<i64: 128, 128>}, {transform_indices = @transform_1, window_bounds = array<i64: 128, 128>}, {pipeline_mode = #tpu.pipeline_mode<synchronous>, transform_indices = @transform_2, window_bounds = array<i64: 128, 128>}, {pipeline_mode = #tpu.pipeline_mode<synchronous>, transform_indices = @transform_3, window_bounds = array<i64: 1, 128>}, {pipeline_mode = #tpu.pipeline_mode<synchronous>, transform_indices = @transform_4, window_bounds = array<i64: 1, 128>}, {pipeline_mode = #tpu.pipeline_mode<synchronous>, transform_indices = @transform_5, window_bounds = array<i64: 1, 128>}, {transform_indices = @transform_6, window_bounds = array<i64: 128, 128>}, {transform_indices = @transform_7, window_bounds = array<i64: 128, 128>}]} {
    %c0_i32 = arith.constant 0 : i32
    %0 = arith.cmpi eq, %arg1, %c0_i32 : i32
    %1 = arith.extui %0 : i1 to i32
    %c0_i32_0 = arith.constant 0 : i32
    %2 = arith.cmpi ne, %1, %c0_i32_0 : i32
    scf.if %2 {
      %cst_9 = arith.constant 0.000000e+00 : f32
      %12 = vector.broadcast %cst_9 : f32 to vector<128x128xf32>
      %c0_10 = arith.constant 0 : index
      %c0_11 = arith.constant 0 : index
      %13 = vector.load %arg10[%c0_10, %c0_11] : memref<128x128xf32, #tpu.memory_space<vmem>>, vector<128x128xf32>
      tpu.vector_store %arg10[%c0_10, %c0_11], %12 {strides = array<i32>} : memref<128x128xf32, #tpu.memory_space<vmem>>, vector<128x128xf32>,
    } else {
    }
    %c0 = arith.constant 0 : index
    %c0_1 = arith.constant 0 : index
    %3 = vector.load %arg10[%c0, %c0_1] : memref<128x128xf32, #tpu.memory_space<vmem>>, vector<128x128xf32>
    %c0_2 = arith.constant 0 : index
    %c0_3 = arith.constant 0 : index
    %4 = vector.load %arg2[%c0_2, %c0_3] : memref<128x128xbf16, #tpu.memory_space<vmem>>, vector<128x128xbf16>
    %c0_4 = arith.constant 0 : index
    %c0_5 = arith.constant 0 : index
    %5 = vector.load %arg3[%c0_4, %c0_5] : memref<128x128xbf16, #tpu.memory_space<vmem>>, vector<128x128xbf16>
    %cst = arith.constant dense<0.000000e+00> : vector<128x128xf32>
    %6 = tpu.matmul %4, %5, %cst {dimension_numbers = #tpu.dot_dimension_numbers<[1], [0], [0], [1], [0, 0, 1, 1], [], []>} : vector<128x128xbf16>, vector<128x128xbf16>, vector<128x128xf32> -> vector<128x128xf32>
    %7 = arith.addf %3, %6 : vector<128x128xf32>
    %c0_6 = arith.constant 0 : index
    %c0_7 = arith.constant 0 : index
    %8 = vector.load %arg10[%c0_6, %c0_7] : memref<128x128xf32, #tpu.memory_space<vmem>>, vector<128x128xf32>
    tpu.vector_store %arg10[%c0_6, %c0_7], %7 {strides = array<i32>} : memref<128x128xf32, #tpu.memory_space<vmem>>, vector<128x128xf32>,
    %c1_i32 = arith.constant 1 : i32
    %9 = arith.cmpi eq, %arg1, %c1_i32 : i32
    %10 = arith.extui %9 : i1 to i32
    %c0_i32_8 = arith.constant 0 : i32
    %11 = arith.cmpi ne, %10, %c0_i32_8 : i32
    scf.if %11 {
      %c0_9 = arith.constant 0 : index
      %c0_10 = arith.constant 0 : index
      %12 = vector.load %arg10[%c0_9, %c0_10] : memref<128x128xf32, #tpu.memory_space<vmem>>, vector<128x128xf32>
      %13 = arith.truncf %12 : vector<128x128xf32> to vector<128x128xbf16>
      %c0_11 = arith.constant 0 : index
      %c0_12 = arith.constant 0 : index
      %14 = vector.load %arg4[%c0_11, %c0_12] : memref<128x128xbf16, #tpu.memory_space<vmem>>, vector<128x128xbf16>
      %cst_13 = arith.constant dense<0.000000e+00> : vector<128x128xf32>
      %15 = tpu.matmul %13, %14, %cst_13 {dimension_numbers = #tpu.dot_dimension_numbers<[1], [0], [0], [1], [0, 0, 1, 1], [], []>} : vector<128x128xbf16>, vector<128x128xbf16>, vector<128x128xf32> -> vector<128x128xf32>
      %c0_14 = arith.constant 0 : index
      %c0_15 = arith.constant 0 : index
      %16 = vector.load %arg5[%c0_14, %c0_15] : memref<1x128xf32, #tpu.memory_space<vmem>>, vector<1x128xf32>
      %17 = vector.broadcast %16 : vector<1x128xf32> to vector<128x128xf32>
      %18 = arith.addf %15, %17 : vector<128x128xf32>
      %cst_16 = arith.constant 0.000000e+00 : f32
      %19 = vector.broadcast %cst_16 : f32 to vector<128x128xf32>
      %20 = arith.maximumf %18, %19 : vector<128x128xf32>
      %c0_17 = arith.constant 0 : index
      %c0_18 = arith.constant 0 : index
      %21 = vector.load %arg8[%c0_17, %c0_18] : memref<128x128xbf16, #tpu.memory_space<vmem>>, vector<128x128xbf16>
      %22 = arith.extf %21 : vector<128x128xbf16> to vector<128x128xf32>
      %23 = arith.mulf %20, %22 : vector<128x128xf32>
      %cst_19 = arith.constant 1.42857146 : f32
      %24 = vector.broadcast %cst_19 : f32 to vector<128x128xf32>
      %25 = arith.mulf %23, %24 : vector<128x128xf32>
      %cst_20 = arith.constant dense<0.000000e+00> : vector<128xf32>
      %26 = vector.multi_reduction <add>, %25, %cst_20 [1] : vector<128x128xf32> to vector<128xf32>
      %27 = vector.shape_cast %26 : vector<128xf32> to vector<128x1xf32>
      %28 = arith.mulf %25, %25 : vector<128x128xf32>
      %cst_21 = arith.constant dense<0.000000e+00> : vector<128xf32>
      %29 = vector.multi_reduction <add>, %28, %cst_21 [1] : vector<128x128xf32> to vector<128xf32>
      %30 = vector.shape_cast %29 : vector<128xf32> to vector<128x1xf32>
      %cst_22 = arith.constant 3.125000e-02 : f32
      %31 = vector.broadcast %cst_22 : f32 to vector<128x1xf32>
      %32 = arith.mulf %27, %31 : vector<128x1xf32>
      %cst_23 = arith.constant 3.125000e-02 : f32
      %33 = vector.broadcast %cst_23 : f32 to vector<128x1xf32>
      %34 = arith.mulf %30, %33 : vector<128x1xf32>
      %35 = arith.mulf %32, %32 : vector<128x1xf32>
      %36 = arith.subf %34, %35 : vector<128x1xf32>
      %37 = vector.broadcast %32 : vector<128x1xf32> to vector<128x128xf32>
      %38 = arith.subf %25, %37 : vector<128x128xf32>
      %cst_24 = arith.constant 9.99999974E-6 : f32
      %39 = vector.broadcast %cst_24 : f32 to vector<128x1xf32>
      %40 = arith.addf %36, %39 : vector<128x1xf32>
      %41 = math.rsqrt %40 : vector<128x1xf32>
      %42 = vector.broadcast %41 : vector<128x1xf32> to vector<128x128xf32>
      %43 = arith.mulf %38, %42 : vector<128x128xf32>
      %c0_25 = arith.constant 0 : index
      %c0_26 = arith.constant 0 : index
      %44 = vector.load %arg6[%c0_25, %c0_26] : memref<1x128xf32, #tpu.memory_space<vmem>>, vector<1x128xf32>
      %45 = vector.broadcast %44 : vector<1x128xf32> to vector<128x128xf32>
      %46 = arith.mulf %43, %45 : vector<128x128xf32>
      %c0_27 = arith.constant 0 : index
      %c0_28 = arith.constant 0 : index
      %47 = vector.load %arg7[%c0_27, %c0_28] : memref<1x128xf32, #tpu.memory_space<vmem>>, vector<1x128xf32>
      %48 = vector.broadcast %47 : vector<1x128xf32> to vector<128x128xf32>
      %49 = arith.addf %46, %48 : vector<128x128xf32>
      %50 = arith.truncf %49 : vector<128x128xf32> to vector<128x128xbf16>
      %c0_29 = arith.constant 0 : index
      %c0_30 = arith.constant 0 : index
      %51 = vector.load %arg9[%c0_29, %c0_30] : memref<128x128xbf16, #tpu.memory_space<vmem>>, vector<128x128xbf16>
      tpu.vector_store %arg9[%c0_29, %c0_30], %50 {strides = array<i32>} : memref<128x128xbf16, #tpu.memory_space<vmem>>, vector<128x128xbf16>,
    } else {
    }
    return
  }
  func.func @transform_0(%arg0: i32, %arg1: i32) -> (i32, i32) {
    %c0_i32 = arith.constant 0 : i32
    return %arg0, %arg1 : i32, i32
  }
  func.func @transform_1(%arg0: i32, %arg1: i32) -> (i32, i32) {
    %c0_i32 = arith.constant 0 : i32
    %c0_i32_0 = arith.constant 0 : i32
    return %arg1, %c0_i32 : i32, i32
  }
  func.func @transform_2(%arg0: i32, %arg1: i32) -> (i32, i32) {
    %c0_i32 = arith.constant 0 : i32
    %c0_i32_0 = arith.constant 0 : i32
    %c0_i32_1 = arith.constant 0 : i32
    return %c0_i32, %c0_i32_0 : i32, i32
  }
  func.func @transform_3(%arg0: i32, %arg1: i32) -> (i32, i32) {
    %c0_i32 = arith.constant 0 : i32
    %c0_i32_0 = arith.constant 0 : i32
    %c0_i32_1 = arith.constant 0 : i32
    return %c0_i32, %c0_i32_0 : i32, i32
  }
  func.func @transform_4(%arg0: i32, %arg1: i32) -> (i32, i32) {
    %c0_i32 = arith.constant 0 : i32
    %c0_i32_0 = arith.constant 0 : i32
    %c0_i32_1 = arith.constant 0 : i32
    return %c0_i32, %c0_i32_0 : i32, i32
  }
  func.func @transform_5(%arg0: i32, %arg1: i32) -> (i32, i32) {
    %c0_i32 = arith.constant 0 : i32
    %c0_i32_0 = arith.constant 0 : i32
    %c0_i32_1 = arith.constant 0 : i32
    return %c0_i32, %c0_i32_0 : i32, i32
  }
  func.func @transform_6(%arg0: i32, %arg1: i32) -> (i32, i32) {
    %c0_i32 = arith.constant 0 : i32
    %c0_i32_0 = arith.constant 0 : i32
    return %arg0, %c0_i32 : i32, i32
  }
  func.func @transform_7(%arg0: i32, %arg1: i32) -> (i32, i32) {
    %c0_i32 = arith.constant 0 : i32
    %c0_i32_0 = arith.constant 0 : i32
    return %arg0, %c0_i32 : i32, i32
  }
}

</mosaic_0001>

<llo_original>
// kernel: tpu_custom_call.1
$region0: #{tpu_custom_call.1}
  #allocation0 [shape = 'u32[]', space=smem, size = 0x4, offset = 0x4, fixed_abs, tag = 'smem constant byte address 0x4 - core index']
  #allocation1 [shape = 'u32[144,128]{1,0:T(1,128)}', space=vmem, size = 0x12000, scoped, tag = 'internal scratch']
  #allocation2 [shape = 'f32[128,128]{1,0:T(8,128)}', space=vmem, size = 0x10000, scoped, tag = 'scratch operand']
  %s0 = inlined_call_operand.hbm [shape: bf16[256,256], index: 0, kind: input, shape index: {}]
  %s1 = inlined_call_operand.hbm [shape: bf16[256,128], index: 1, kind: input, shape index: {}]
  %s2 = inlined_call_operand.hbm [shape: bf16[128,128], index: 2, kind: input, shape index: {}]
  %s3 = inlined_call_operand.vmem [shape: f32[1,128], index: 3, kind: input, shape index: {}]
  %s4 = inlined_call_operand.vmem [shape: f32[1,128], index: 4, kind: input, shape index: {}]
  %s5 = inlined_call_operand.vmem [shape: f32[1,128], index: 5, kind: input, shape index: {}]
  %s6 = inlined_call_operand.hbm [shape: bf16[256,128], index: 6, kind: input, shape index: {}]
  %s7 = inlined_call_operand.hbm [shape: bf16[256,128], index: 7, kind: output, shape index: {}]
  %s8 = sld [smem:[#allocation0]]
  $region85: #{tpu_custom_call.1} parent=0
    _
  %s10 = ssub.s32 1, %s8
  %s11 = scalar_select 0, %s10, %s8
  $region1: #{tpu_custom_call.1} parent=0
    #allocation3 [shape = 'u8[65536]{0}', space=vmem, size = 0x10000, scoped, tag = 'input window, operand 0']
    #allocation4 [shape = 's32[2]{0}', space=sflag, size = 0x8, scoped, tag = 'scoped memory for tpu_custom_call.1']
    #allocation5 [shape = 's32[2]{0}', space=sflag, size = 0x8, scoped, tag = 'scoped memory for tpu_custom_call.1']
    #allocation6 [shape = 'u8[65536]{0}', space=vmem, size = 0x10000, scoped, tag = 'input window, operand 1']
    #allocation7 [shape = 's32[2]{0}', space=sflag, size = 0x8, scoped, tag = 'scoped memory for tpu_custom_call.1']
    #allocation8 [shape = 'u8[32768]{0}', space=vmem, size = 0x8000, scoped, tag = 'input window, operand 2, single buffered']
    #allocation9 [shape = 'u8[65536]{0}', space=vmem, size = 0x10000, scoped, tag = 'input window, operand 6']
    #allocation10 [shape = 's32[2]{0}', space=sflag, size = 0x8, scoped, tag = 'scoped memory for tpu_custom_call.1']
    #allocation11 [shape = 'u8[65536]{0}', space=vmem, size = 0x10000, scoped, tag = 'output window, operand 0']
    %12 = vsyncpa [#allocation4], 0
    %s13 = scalar_lea.sflag [#allocation4], 1
    %14 = vsyncpa %s13, 0
    %15 = vsyncpa [#allocation7], 0
    %s16 = scalar_lea.sflag [#allocation7], 1
    %17 = vsyncpa %s16, 0
    %18 = vsyncpa [#allocation10], 0
    %s19 = scalar_lea.sflag [#allocation10], 1
    %20 = vsyncpa %s19, 0
    %21 = vsyncpa [#allocation5], 0
    %s22 = scalar_lea.sflag [#allocation5], 1
    %23 = vsyncpa %s22, 0
    loop: start=0, step=1, limit=6
    $region2: #{tpu_custom_call.1} parent=1 // loop_pre_header
      _
    $region3: #{tpu_custom_call.1} parent=1 // loop_header
      %s25 = sphi 0, %s29
      %p26 = scmp.ge.s32.totalorder %s25, 6
      %s32 = sphi 0, %s44
      %s33 = sphi 0, %s40
      %s34 = sphi 0, %s32
      %s35 = sphi 0, %s33
      %s36 = sphi 0, %s34
      %s37 = sphi 0, %s35
      %s49 = sphi 0, %s51
      %s52 = sphi 0, %s49
      %s53 = sphi 0, %s52
      %s69 = sphi 0, %s53
      %s75 = sphi 0, %s77
      %s78 = sphi 0, %s75
      %s79 = sphi 0, %s78
      %s95 = sphi 0, %s79
      %s99 = sphi 0, %s99
      %s101 = sphi 0, %s99
      %s102 = sphi 0, %s101
      %s116 = sphi 0, %s102
      %s120 = sphi 0, %s120
      %s122 = sphi 0, %s120
      %s123 = sphi 0, %s122
      %s137 = sphi 0, %s123
      %s141 = sphi 0, %s141
      %s143 = sphi 0, %s141
      %s144 = sphi 0, %s143
      %s158 = sphi 0, %s144
      %s162 = sphi 0, %s162
      %s164 = sphi 0, %s162
      %s165 = sphi 0, %s164
      %s179 = sphi 0, %s165
      %s185 = sphi 0, %s187
      %s188 = sphi 0, %s185
      %s189 = sphi 0, %s188
      %s205 = sphi 0, %s189
      %s211 = sphi 0, %s213
      %s214 = sphi 0, %s211
      %s215 = sphi 0, %s214
      %s231 = sphi 0, %s215
    $region4: #{tpu_custom_call.1} parent=1 // loop_header_branch
      %28 = sbr.rel (%p26) target = $region8
    $region5: #{tpu_custom_call.1} parent=1 // loop_body
      %s30 = ssub.s32 %s25, 1
      %s31 = ssub.s32 %s25, 2
      %s38 = sadd.s32 1, %s33
      %p39 = scmp.ge.s32.totalorder %s38, 2
      %s40 = scalar_select %p39, 0, %s38
      %s41 = sadd.s32 1, %s32
      %s42 = scalar_select %p39, %s41, %s32
      %p43 = scmp.ge.s32.totalorder %s42, 2
      %s44 = scalar_select %p43, 0, %s42
      %s45 = ssub.s32 %s32, %s44
      %s46 = ssub.s32 %s33, %s40
      %s47 = sor.u32 %s45, %s46
      %p48 = scmp.eq.s32.totalorder %s47, 0
      %s50 = sadd.s32 %s49, 1
      %s51 = scalar_select %p48, %s49, %s50
      %p54 = pneg %p48
      %p55 = scmp.eq.s32.totalorder %s25, 3
      %p56 = por %p54, %p55
      %p57 = scmp.ne.s32.totalorder %s49, %s52
      %p58 = scmp.eq.s32.totalorder %s25, 0
      %p59 = por %p57, %p58
      %p60 = scmp.ne.s32.totalorder %s49, %s52
      %p61 = scmp.eq.s32.totalorder %s30, 3
      %p62 = por %p60, %p61
      %p63 = scmp.ne.s32.totalorder %s52, %s53
      %p64 = scmp.eq.s32.totalorder %s30, 0
      %p65 = por %p63, %p64
      %p66 = scmp.ne.s32.totalorder %s52, %s53
      %p67 = scmp.eq.s32.totalorder %s31, 3
      %p68 = por %p66, %p67
      %p70 = scmp.ne.s32.totalorder %s53, %s69
      %p71 = scmp.eq.s32.totalorder %s31, 0
      %p72 = por %p70, %p71
      %s73 = ssub.s32 %s33, %s40
      %p74 = scmp.eq.s32.totalorder %s73, 0
      %s76 = sadd.s32 %s75, 1
      %s77 = scalar_select %p74, %s75, %s76
      %p80 = pneg %p74
      %p81 = scmp.eq.s32.totalorder %s25, 3
      %p82 = por %p80, %p81
      %p83 = scmp.ne.s32.totalorder %s75, %s78
      %p84 = scmp.eq.s32.totalorder %s25, 0
      %p85 = por %p83, %p84
      %p86 = scmp.ne.s32.totalorder %s75, %s78
      %p87 = scmp.eq.s32.totalorder %s30, 3
      %p88 = por %p86, %p87
      %p89 = scmp.ne.s32.totalorder %s78, %s79
      %p90 = scmp.eq.s32.totalorder %s30, 0
      %p91 = por %p89, %p90
      %p92 = scmp.ne.s32.totalorder %s78, %s79
      %p93 = scmp.eq.s32.totalorder %s31, 3
      %p94 = por %p92, %p93
      %p96 = scmp.ne.s32.totalorder %s79, %s95
      %p97 = scmp.eq.s32.totalorder %s31, 0
      %p98 = por %p96, %p97
      %s100 = sadd.s32 %s99, 1
      %p103 = scmp.eq.s32.totalorder %s25, 3
      %p104 = scmp.ne.s32.totalorder %s99, %s101
      %p105 = scmp.eq.s32.totalorder %s25, 0
      %p106 = por %p104, %p105
      %p107 = scmp.ne.s32.totalorder %s99, %s101
      %p108 = scmp.eq.s32.totalorder %s30, 3
      %p109 = por %p107, %p108
      %p110 = scmp.ne.s32.totalorder %s101, %s102
      %p111 = scmp.eq.s32.totalorder %s30, 0
      %p112 = por %p110, %p111
      %p113 = scmp.ne.s32.totalorder %s101, %s102
      %p114 = scmp.eq.s32.totalorder %s31, 3
      %p115 = por %p113, %p114
      %p117 = scmp.ne.s32.totalorder %s102, %s116
      %p118 = scmp.eq.s32.totalorder %s31, 0
      %p119 = por %p117, %p118
      %s121 = sadd.s32 %s120, 1
      %p124 = scmp.eq.s32.totalorder %s25, 3
      %p125 = scmp.ne.s32.totalorder %s120, %s122
      %p126 = scmp.eq.s32.totalorder %s25, 0
      %p127 = por %p125, %p126
      %p128 = scmp.ne.s32.totalorder %s120, %s122
      %p129 = scmp.eq.s32.totalorder %s30, 3
      %p130 = por %p128, %p129
      %p131 = scmp.ne.s32.totalorder %s122, %s123
      %p132 = scmp.eq.s32.totalorder %s30, 0
      %p133 = por %p131, %p132
      %p134 = scmp.ne.s32.totalorder %s122, %s123
      %p135 = scmp.eq.s32.totalorder %s31, 3
      %p136 = por %p134, %p135
      %p138 = scmp.ne.s32.totalorder %s123, %s137
      %p139 = scmp.eq.s32.totalorder %s31, 0
      %p140 = por %p138, %p139
      %s142 = sadd.s32 %s141, 1
      %p145 = scmp.eq.s32.totalorder %s25, 3
      %p146 = scmp.ne.s32.totalorder %s141, %s143
      %p147 = scmp.eq.s32.totalorder %s25, 0
      %p148 = por %p146, %p147
      %p149 = scmp.ne.s32.totalorder %s141, %s143
      %p150 = scmp.eq.s32.totalorder %s30, 3
      %p151 = por %p149, %p150
      %p152 = scmp.ne.s32.totalorder %s143, %s144
      %p153 = scmp.eq.s32.totalorder %s30, 0
      %p154 = por %p152, %p153
      %p155 = scmp.ne.s32.totalorder %s143, %s144
      %p156 = scmp.eq.s32.totalorder %s31, 3
      %p157 = por %p155, %p156
      %p159 = scmp.ne.s32.totalorder %s144, %s158
      %p160 = scmp.eq.s32.totalorder %s31, 0
      %p161 = por %p159, %p160
      %s163 = sadd.s32 %s162, 1
      %p166 = scmp.eq.s32.totalorder %s25, 3
      %p167 = scmp.ne.s32.totalorder %s162, %s164
      %p168 = scmp.eq.s32.totalorder %s25, 0
      %p169 = por %p167, %p168
      %p170 = scmp.ne.s32.totalorder %s162, %s164
      %p171 = scmp.eq.s32.totalorder %s30, 3
      %p172 = por %p170, %p171
      %p173 = scmp.ne.s32.totalorder %s164, %s165
      %p174 = scmp.eq.s32.totalorder %s30, 0
      %p175 = por %p173, %p174
      %p176 = scmp.ne.s32.totalorder %s164, %s165
      %p177 = scmp.eq.s32.totalorder %s31, 3
      %p178 = por %p176, %p177
      %p180 = scmp.ne.s32.totalorder %s165, %s179
      %p181 = scmp.eq.s32.totalorder %s31, 0
      %p182 = por %p180, %p181
      %s183 = ssub.s32 %s32, %s44
      %p184 = scmp.eq.s32.totalorder %s183, 0
      %s186 = sadd.s32 %s185, 1
      %s187 = scalar_select %p184, %s185, %s186
      %p190 = pneg %p184
      %p191 = scmp.eq.s32.totalorder %s25, 3
      %p192 = por %p190, %p191
      %p193 = scmp.ne.s32.totalorder %s185, %s188
      %p194 = scmp.eq.s32.totalorder %s25, 0
      %p195 = por %p193, %p194
      %p196 = scmp.ne.s32.totalorder %s185, %s188
      %p197 = scmp.eq.s32.totalorder %s30, 3
      %p198 = por %p196, %p197
      %p199 = scmp.ne.s32.totalorder %s188, %s189
      %p200 = scmp.eq.s32.totalorder %s30, 0
      %p201 = por %p199, %p200
      %p202 = scmp.ne.s32.totalorder %s188, %s189
      %p203 = scmp.eq.s32.totalorder %s31, 3
      %p204 = por %p202, %p203
      %p206 = scmp.ne.s32.totalorder %s189, %s205
      %p207 = scmp.eq.s32.totalorder %s31, 0
      %p208 = por %p206, %p207
      %s209 = ssub.s32 %s32, %s44
      %p210 = scmp.eq.s32.totalorder %s209, 0
      %s212 = sadd.s32 %s211, 1
      %s213 = scalar_select %p210, %s211, %s212
      %p216 = pneg %p210
      %p217 = scmp.eq.s32.totalorder %s25, 3
      %p218 = por %p216, %p217
      %p219 = scmp.ne.s32.totalorder %s211, %s214
      %p220 = scmp.eq.s32.totalorder %s25, 0
      %p221 = por %p219, %p220
      %p222 = scmp.ne.s32.totalorder %s211, %s214
      %p223 = scmp.eq.s32.totalorder %s30, 3
      %p224 = por %p222, %p223
      %p225 = scmp.ne.s32.totalorder %s214, %s215
      %p226 = scmp.eq.s32.totalorder %s30, 0
      %p227 = por %p225, %p226
      %p228 = scmp.ne.s32.totalorder %s214, %s215
      %p229 = scmp.eq.s32.totalorder %s31, 3
      %p230 = por %p228, %p229
      %p232 = scmp.ne.s32.totalorder %s215, %s231
      %p233 = scmp.eq.s32.totalorder %s31, 0
      %p234 = por %p232, %p233
      %p235 = scmp.le.s32.totalorder 1, %s25
      %p236 = scmp.lt.s32.totalorder %s25, 5
      %p237 = pnand %p235, %p236
      %p238 = pneg %p237
      // Predicated region
      $region9: #{tpu_custom_call.1} parent=5 // pred_check
        _
      $region10: #{tpu_custom_call.1} parent=5 // pred_check_branch
        %240 = sbr.rel (%p237) target = $region12
      $region11: #{tpu_custom_call.1} parent=5 // pred_region
        %s241 = ssub.s32 %s25, 1
        // Predicated region
        $region13: #{tpu_custom_call.1} parent=11 // pred_check
          %p242 = pneg %p112
        $region14: #{tpu_custom_call.1} parent=11 // pred_check_branch
          %244 = sbr.rel (%p242) target = $region16
        $region15: #{tpu_custom_call.1} parent=11 // pred_region
          %s246 = ssub.s32 1024, 1024
          %247 = vsyncadd [#allocation7], %s246
          %s248 = sshll.u32 [#allocation8], 4
          %s249 = int_to_ptr.vmem [resolvable:$true] %s248
          %254 = dma.hbm_to_vmem [thread:$0]  %s2, 1024, %s249, [#allocation7], 64, 64, 4
        $region16: #{tpu_custom_call.1} parent=11 // pred_fallthru
          _
        // Predicated region
        $region17: #{tpu_custom_call.1} parent=11 // pred_check
          %p255 = pneg %p133
        $region18: #{tpu_custom_call.1} parent=11 // pred_check_branch
          %257 = sbr.rel (%p255) target = $region20
        $region19: #{tpu_custom_call.1} parent=11 // pred_region
          _
        $region20: #{tpu_custom_call.1} parent=11 // pred_fallthru
          _
        // Predicated region
        $region21: #{tpu_custom_call.1} parent=11 // pred_check
          %p258 = pneg %p154
        $region22: #{tpu_custom_call.1} parent=11 // pred_check_branch
          %260 = sbr.rel (%p258) target = $region24
        $region23: #{tpu_custom_call.1} parent=11 // pred_region
          _
        $region24: #{tpu_custom_call.1} parent=11 // pred_fallthru
          _
        // Predicated region
        $region25: #{tpu_custom_call.1} parent=11 // pred_check
          %p261 = pneg %p175
        $region26: #{tpu_custom_call.1} parent=11 // pred_check_branch
          %263 = sbr.rel (%p261) target = $region28
        $region27: #{tpu_custom_call.1} parent=11 // pred_region
          _
        $region28: #{tpu_custom_call.1} parent=11 // pred_fallthru
          _
      $region12: #{tpu_custom_call.1} parent=5 // pred_fallthru
        _
      %p264 = scmp.lt.s32.totalorder %s25, 4
      // Predicated region
      $region29: #{tpu_custom_call.1} parent=5 // pred_check
        %p265 = pneg %p264
      $region30: #{tpu_custom_call.1} parent=5 // pred_check_branch
        %267 = sbr.rel (%p265) target = $region32
      $region31: #{tpu_custom_call.1} parent=5 // pred_region
        // Predicated region
        $region33: #{tpu_custom_call.1} parent=31 // pred_check
          %p268 = pneg %p59
        $region34: #{tpu_custom_call.1} parent=31 // pred_check_branch
          %270 = sbr.rel (%p268) target = $region36
        $region35: #{tpu_custom_call.1} parent=31 // pred_region
          %s271 = sand.u32 %s49, 1
          %s272 = scalar_lea.sflag [#allocation4], %s271
          %s273 = sand.u32 %s49, 1
          %s274 = smul.addr %s273, 64
          %s275 = scalar_lea.vmem [#allocation3], %s274
          %s276 = smul.u32 16, %s32
          %s278 = ssub.s32 1024, 1024
          %279 = vsyncadd %s272, %s278
          %s280 = smul.addr %s276, 2
          %s281 = sadd.s32 %s33, %s280
          %s282 = smul.addr %s281, 64
          %s283 = scalar_lea.hbm %s0, %s282
          %s284 = sshll.u32 %s275, 4
          %s285 = int_to_ptr.vmem [resolvable:$true] %s284
          %290 = dma.hbm_to_vmem [thread:$0]  %s283, 1024, %s285, %s272, 128, 64, 4
        $region36: #{tpu_custom_call.1} parent=31 // pred_fallthru
          _
        // Predicated region
        $region37: #{tpu_custom_call.1} parent=31 // pred_check
          %p291 = pneg %p85
        $region38: #{tpu_custom_call.1} parent=31 // pred_check_branch
          %293 = sbr.rel (%p291) target = $region40
        $region39: #{tpu_custom_call.1} parent=31 // pred_region
          %s294 = sand.u32 %s25, 1
          %s295 = scalar_lea.sflag [#allocation7], %s294
          %s296 = sand.u32 %s75, 1
          %s297 = smul.addr %s296, 64
          %s298 = scalar_lea.vmem [#allocation6], %s297
          %s299 = smul.u32 16, %s33
          %s301 = ssub.s32 1024, 1024
          %302 = vsyncadd %s295, %s301
          %s303 = smul.addr %s299, 64
          %s304 = scalar_lea.hbm %s1, %s303
          %s305 = sshll.u32 %s298, 4
          %s306 = int_to_ptr.vmem [resolvable:$true] %s305
          %311 = dma.hbm_to_vmem [thread:$0]  %s304, 1024, %s306, %s295, 64, 64, 4
        $region40: #{tpu_custom_call.1} parent=31 // pred_fallthru
          _
        // Predicated region
        $region41: #{tpu_custom_call.1} parent=31 // pred_check
          %p312 = pneg %p195
        $region42: #{tpu_custom_call.1} parent=31 // pred_check_branch
          %314 = sbr.rel (%p312) target = $region44
        $region43: #{tpu_custom_call.1} parent=31 // pred_region
          %s315 = sand.u32 %s185, 1
          %s316 = scalar_lea.sflag [#allocation10], %s315
          %s317 = sand.u32 %s185, 1
          %s318 = smul.addr %s317, 64
          %s319 = scalar_lea.vmem [#allocation9], %s318
          %s320 = smul.u32 16, %s32
          %s322 = ssub.s32 1024, 1024
          %323 = vsyncadd %s316, %s322
          %s324 = smul.addr %s320, 64
          %s325 = scalar_lea.hbm %s6, %s324
          %s326 = sshll.u32 %s319, 4
          %s327 = int_to_ptr.vmem [resolvable:$true] %s326
          %332 = dma.hbm_to_vmem [thread:$0]  %s325, 1024, %s327, %s316, 64, 64, 4
        $region44: #{tpu_custom_call.1} parent=31 // pred_fallthru
          _
      $region32: #{tpu_custom_call.1} parent=5 // pred_fallthru
        _
      %p333 = scmp.le.s32.totalorder 1, %s25
      %p334 = scmp.lt.s32.totalorder %s25, 5
      %p335 = pnand %p333, %p334
      %p336 = pneg %p335
      // Predicated region
      $region45: #{tpu_custom_call.1} parent=5 // pred_check
        _
      $region46: #{tpu_custom_call.1} parent=5 // pred_check_branch
        %338 = sbr.rel (%p335) target = $region48
      $region47: #{tpu_custom_call.1} parent=5 // pred_region
        %s339 = ssub.s32 %s25, 1
        %s340 = sand.u32 %s52, 1
        %s341 = scalar_lea.sflag [#allocation4], %s340
        %s342 = sand.u32 %s52, 1
        %s343 = smul.addr %s342, 64
        %s344 = scalar_lea.vmem [#allocation3], %s343
        // Predicated region
        $region49: #{tpu_custom_call.1} parent=47 // pred_check
          %p345 = pneg %p65
        $region50: #{tpu_custom_call.1} parent=47 // pred_check_branch
          %347 = sbr.rel (%p345) target = $region52
        $region51: #{tpu_custom_call.1} parent=47 // pred_region
          %348 = dma.done %s341, 1024
        $region52: #{tpu_custom_call.1} parent=47 // pred_fallthru
          _
        %s349 = sand.u32 %s30, 1
        %s350 = scalar_lea.sflag [#allocation7], %s349
        %s351 = sand.u32 %s78, 1
        %s352 = smul.addr %s351, 64
        %s353 = scalar_lea.vmem [#allocation6], %s352
        // Predicated region
        $region53: #{tpu_custom_call.1} parent=47 // pred_check
          %p354 = pneg %p91
        $region54: #{tpu_custom_call.1} parent=47 // pred_check_branch
          %356 = sbr.rel (%p354) target = $region56
        $region55: #{tpu_custom_call.1} parent=47 // pred_region
          %357 = dma.done %s350, 1024
        $region56: #{tpu_custom_call.1} parent=47 // pred_fallthru
          _
        // Predicated region
        $region57: #{tpu_custom_call.1} parent=47 // pred_check
          %p358 = pneg %p112
        $region58: #{tpu_custom_call.1} parent=47 // pred_check_branch
          %360 = sbr.rel (%p358) target = $region60
        $region59: #{tpu_custom_call.1} parent=47 // pred_region
          %361 = dma.done [#allocation7], 1024
        $region60: #{tpu_custom_call.1} parent=47 // pred_fallthru
          _
        %s362 = sand.u32 %s188, 1
        %s363 = scalar_lea.sflag [#allocation10], %s362
        %s364 = sand.u32 %s188, 1
        %s365 = smul.addr %s364, 64
        %s366 = scalar_lea.vmem [#allocation9], %s365
        // Predicated region
        $region61: #{tpu_custom_call.1} parent=47 // pred_check
          %p367 = pneg %p201
        $region62: #{tpu_custom_call.1} parent=47 // pred_check_branch
          %369 = sbr.rel (%p367) target = $region64
        $region63: #{tpu_custom_call.1} parent=47 // pred_region
          %370 = dma.done %s363, 1024
        $region64: #{tpu_custom_call.1} parent=47 // pred_fallthru
          _
        %s371 = sand.u32 %s52, 1
        %s372 = scalar_lea.sflag [#allocation4], %s371
        %s373 = sand.u32 %s52, 1
        %s374 = smul.addr %s373, 64
        %s375 = scalar_lea.vmem [#allocation3], %s374
        %p376 = pneg %p65
        %p377 = pneg %p62
        %s378 = sand.u32 %s30, 1
        %s379 = scalar_lea.sflag [#allocation7], %s378
        %s380 = sand.u32 %s78, 1
        %s381 = smul.addr %s380, 64
        %s382 = scalar_lea.vmem [#allocation6], %s381
        %p383 = pneg %p91
        %p384 = pneg %p88
        %p385 = pneg %p112
        %p386 = pneg %p109
        %p387 = pneg %p133
        %p388 = pneg %p130
        %p389 = pneg %p154
        %p390 = pneg %p151
        %p391 = pneg %p175
        %p392 = pneg %p172
        %s393 = sand.u32 %s188, 1
        %s394 = scalar_lea.sflag [#allocation10], %s393
        %s395 = sand.u32 %s188, 1
        %s396 = smul.addr %s395, 64
        %s397 = scalar_lea.vmem [#allocation9], %s396
        %p398 = pneg %p201
        %p399 = pneg %p198
        %p400 = pneg %p227
        %p401 = pneg %p224
        %s402 = sand.u32 %s214, 1
        %s403 = scalar_lea.sflag [#allocation5], %s402
        %s404 = sand.u32 %s214, 1
        %s405 = smul.addr %s404, 64
        %s406 = scalar_lea.vmem [#allocation11], %s405
        %s407 = smul.u32 16, %s34
        %s408 = smul.u32 16, %s35
        %s409 = smul.u32 16, %s34
        %s410 = smul.u32 16, %s34
        %p412 = scmp.eq.s32.totalorder %s35, 0
        // Predicated region
        $region65: #{tpu_custom_call.1} parent=47 // pred_check
          %p413 = pneg %p412
        $region66: #{tpu_custom_call.1} parent=47 // pred_check_branch
          %415 = sbr.rel (%p413) target = $region68
        $region67: #{tpu_custom_call.1} parent=47 // pred_region
          %416 = vst [vmem:[#allocation2] sm:$0xff] 0.0
          %417 = vst [vmem:[#allocation2 + $0x8] sm:$0xff] 0.0
          %418 = vst [vmem:[#allocation2 + $0x10] sm:$0xff] 0.0
          %419 = vst [vmem:[#allocation2 + $0x18] sm:$0xff] 0.0
          %420 = vst [vmem:[#allocation2 + $0x20] sm:$0xff] 0.0
          %421 = vst [vmem:[#allocation2 + $0x28] sm:$0xff] 0.0
          %422 = vst [vmem:[#allocation2 + $0x30] sm:$0xff] 0.0
          %423 = vst [vmem:[#allocation2 + $0x38] sm:$0xff] 0.0
          %424 = vst [vmem:[#allocation2 + $0x40] sm:$0xff] 0.0
          %425 = vst [vmem:[#allocation2 + $0x48] sm:$0xff] 0.0
          %426 = vst [vmem:[#allocation2 + $0x50] sm:$0xff] 0.0
          %427 = vst [vmem:[#allocation2 + $0x58] sm:$0xff] 0.0
          %428 = vst [vmem:[#allocation2 + $0x60] sm:$0xff] 0.0
          %429 = vst [vmem:[#allocation2 + $0x68] sm:$0xff] 0.0
          %430 = vst [vmem:[#allocation2 + $0x70] sm:$0xff] 0.0
          %431 = vst [vmem:[#allocation2 + $0x78] sm:$0xff] 0.0
        $region68: #{tpu_custom_call.1} parent=47 // pred_fallthru
          _
        %v432 = vld [vmem:[#allocation2] sm:$0xff]
        %v433 = vld [vmem:[#allocation2 + $0x8] sm:$0xff]
        %v434 = vld [vmem:[#allocation2 + $0x10] sm:$0xff]
        %v435 = vld [vmem:[#allocation2 + $0x18] sm:$0xff]
        %v436 = vld [vmem:[#allocation2 + $0x20] sm:$0xff]
        %v437 = vld [vmem:[#allocation2 + $0x28] sm:$0xff]
        %v438 = vld [vmem:[#allocation2 + $0x30] sm:$0xff]
        %v439 = vld [vmem:[#allocation2 + $0x38] sm:$0xff]
        %v440 = vld [vmem:[#allocation2 + $0x40] sm:$0xff]
        %v441 = vld [vmem:[#allocation2 + $0x48] sm:$0xff]
        %v442 = vld [vmem:[#allocation2 + $0x50] sm:$0xff]
        %v443 = vld [vmem:[#allocation2 + $0x58] sm:$0xff]
        %v444 = vld [vmem:[#allocation2 + $0x60] sm:$0xff]
        %v445 = vld [vmem:[#allocation2 + $0x68] sm:$0xff]
        %v446 = vld [vmem:[#allocation2 + $0x70] sm:$0xff]
        %v447 = vld [vmem:[#allocation2 + $0x78] sm:$0xff]
        %v448 = vld [vmem:[%s344] sm:$0xf]
        %v449 = vld [vmem:[%s344 + $0x4] sm:$0xf]
        %v450 = vld [vmem:[%s344 + $0x8] sm:$0xf]
        %v451 = vld [vmem:[%s344 + $0xc] sm:$0xf]
        %v452 = vld [vmem:[%s344 + $0x10] sm:$0xf]
        %v453 = vld [vmem:[%s344 + $0x14] sm:$0xf]
        %v454 = vld [vmem:[%s344 + $0x18] sm:$0xf]
        %v455 = vld [vmem:[%s344 + $0x1c] sm:$0xf]
        %v456 = vld [vmem:[%s344 + $0x20] sm:$0xf]
        %v457 = vld [vmem:[%s344 + $0x24] sm:$0xf]
        %v458 = vld [vmem:[%s344 + $0x28] sm:$0xf]
        %v459 = vld [vmem:[%s344 + $0x2c] sm:$0xf]
        %v460 = vld [vmem:[%s344 + $0x30] sm:$0xf]
        %v461 = vld [vmem:[%s344 + $0x34] sm:$0xf]
        %v462 = vld [vmem:[%s344 + $0x38] sm:$0xf]
        %v463 = vld [vmem:[%s344 + $0x3c] sm:$0xf]
        %v464 = vld [vmem:[%s353] sm:$0xf]
        %v465 = vld [vmem:[%s353 + $0x4] sm:$0xf]
        %v466 = vld [vmem:[%s353 + $0x8] sm:$0xf]
        %v467 = vld [vmem:[%s353 + $0xc] sm:$0xf]
        %v468 = vld [vmem:[%s353 + $0x10] sm:$0xf]
        %v469 = vld [vmem:[%s353 + $0x14] sm:$0xf]
        %v470 = vld [vmem:[%s353 + $0x18] sm:$0xf]
        %v471 = vld [vmem:[%s353 + $0x1c] sm:$0xf]
        %v472 = vld [vmem:[%s353 + $0x20] sm:$0xf]
        %v473 = vld [vmem:[%s353 + $0x24] sm:$0xf]
        %v474 = vld [vmem:[%s353 + $0x28] sm:$0xf]
        %v475 = vld [vmem:[%s353 + $0x2c] sm:$0xf]
        %v476 = vld [vmem:[%s353 + $0x30] sm:$0xf]
        %v477 = vld [vmem:[%s353 + $0x34] sm:$0xf]
        %v478 = vld [vmem:[%s353 + $0x38] sm:$0xf]
        %v479 = vld [vmem:[%s353 + $0x3c] sm:$0xf]
        %v496 = vunpack.c.l.b16 %v448
        %v497 = vunpack.c.l.b16 %v449
        %v498 = vunpack.c.l.b16 %v450
        %v499 = vunpack.c.l.b16 %v451
        %v500 = vunpack.c.l.b16 %v452
        %v501 = vunpack.c.l.b16 %v453
        %v502 = vunpack.c.l.b16 %v454
        %v503 = vunpack.c.l.b16 %v455
        %v504 = vunpack.c.l.b16 %v456
        %v505 = vunpack.c.l.b16 %v457
        %v506 = vunpack.c.l.b16 %v458
        %v507 = vunpack.c.l.b16 %v459
        %v508 = vunpack.c.l.b16 %v460
        %v509 = vunpack.c.l.b16 %v461
        %v510 = vunpack.c.l.b16 %v462
        %v511 = vunpack.c.l.b16 %v463
        %v512 = vpack.c.b16 %v497, %v496
        %v513 = vpack.c.b16 %v499, %v498
        %v514 = vpack.c.b16 %v501, %v500
        %v515 = vpack.c.b16 %v503, %v502
        %v516 = vpack.c.b16 %v505, %v504
        %v517 = vpack.c.b16 %v507, %v506
        %v518 = vpack.c.b16 %v509, %v508
        %v519 = vpack.c.b16 %v511, %v510
        %v544 = vunpack.c.l.b16 %v464
        %v545 = vunpack.c.l.b16 %v465
        %v546 = vunpack.c.l.b16 %v466
        %v547 = vunpack.c.l.b16 %v467
        %v548 = vunpack.c.l.b16 %v468
        %v549 = vunpack.c.l.b16 %v469
        %v550 = vunpack.c.l.b16 %v470
        %v551 = vunpack.c.l.b16 %v471
        %v552 = vunpack.c.l.b16 %v472
        %v553 = vunpack.c.l.b16 %v473
        %v554 = vunpack.c.l.b16 %v474
        %v555 = vunpack.c.l.b16 %v475
        %v556 = vunpack.c.l.b16 %v476
        %v557 = vunpack.c.l.b16 %v477
        %v558 = vunpack.c.l.b16 %v478
        %v559 = vunpack.c.l.b16 %v479
        %v560 = vpack.c.b16 %v545, %v544
        %v561 = vpack.c.b16 %v547, %v546
        %v562 = vpack.c.b16 %v549, %v548
        %v563 = vpack.c.b16 %v551, %v550
        %v564 = vpack.c.b16 %v553, %v552
        %v565 = vpack.c.b16 %v555, %v554
        %v566 = vpack.c.b16 %v557, %v556
        %v567 = vpack.c.b16 %v559, %v558
        %576 = vmatprep.subr.bf16.mxu0 0
        %577 = vmatpush1.bf16.msra.mxu0 %v567
        %578 = vmatprep.subr.bf16.mxu0 0
        %579 = vmatpush1.bf16.msra.mxu0 %v566
        %580 = vmatprep.subr.bf16.mxu0 0
        %581 = vmatpush1.bf16.msra.mxu0 %v565
        %582 = vmatprep.subr.bf16.mxu0 0
        %583 = vmatpush1.bf16.msra.mxu0 %v564
        %584 = vmatprep.subr.bf16.mxu0 0
        %585 = vmatpush1.bf16.msra.mxu0 %v563
        %586 = vmatprep.subr.bf16.mxu0 0
        %587 = vmatpush1.bf16.msra.mxu0 %v562
        %588 = vmatprep.subr.bf16.mxu0 0
        %589 = vmatpush1.bf16.msra.mxu0 %v561
        %590 = vmatprep.subr.bf16.mxu0 0
        %591 = vmatpush1.bf16.msra.mxu0 %v560
        %592 = vmatprep.subr.bf16.mxu0 0
        %593 = vmatpush2.bf16.msra.mxu0 0
        %594 = vmatprep.subr.bf16.mxu0 0
        %595 = vmatpush2.bf16.msra.mxu0 0
        %596 = vmatprep.subr.bf16.mxu0 0
        %597 = vmatpush2.bf16.msra.mxu0 0
        %598 = vmatprep.subr.bf16.mxu0 0
        %599 = vmatpush2.bf16.msra.mxu0 0
        %600 = vmatprep.subr.bf16.mxu0 0
        %601 = vmatpush2.bf16.msra.mxu0 0
        %602 = vmatprep.subr.bf16.mxu0 0
        %603 = vmatpush2.bf16.msra.mxu0 0
        %604 = vmatprep.subr.bf16.mxu0 0
        %605 = vmatpush2.bf16.msra.mxu0 0
        %606 = vmatprep.subr.bf16.mxu0 0
        %607 = vmatpush2.bf16.msra.mxu0 0
        %608 = vmatprep.mubr.bf16.mxu0 0
        %609 = vmatmul.mubr.bf16.gmra.mxu0 %v512
        %v610 = vpop.f32.mrf.mxu0
        %v611 = vadd.f32 0.0, %v610
        %v612 = vpop.f32.mrf.mxu0
        %v613 = vpop.f32.mrf.mxu0
        %v614 = vadd.f32 0.0, %v613
        %v615 = vpop.f32.mrf.mxu0
        %616 = vmatprep.mubr.bf16.mxu0 0
        %617 = vmatmul.mubr.bf16.gmra.mxu0 %v513
        %v618 = vpop.f32.mrf.mxu0
        %v619 = vadd.f32 0.0, %v618
        %v620 = vpop.f32.mrf.mxu0
        %v621 = vpop.f32.mrf.mxu0
        %v622 = vadd.f32 0.0, %v621
        %v623 = vpop.f32.mrf.mxu0
        %624 = vmatprep.mubr.bf16.mxu0 0
        %625 = vmatmul.mubr.bf16.gmra.mxu0 %v514
        %v626 = vpop.f32.mrf.mxu0
        %v627 = vadd.f32 0.0, %v626
        %v628 = vpop.f32.mrf.mxu0
        %v629 = vpop.f32.mrf.mxu0
        %v630 = vadd.f32 0.0, %v629
        %v631 = vpop.f32.mrf.mxu0
        %632 = vmatprep.mubr.bf16.mxu0 0
        %633 = vmatmul.mubr.bf16.gmra.mxu0 %v515
        %v634 = vpop.f32.mrf.mxu0
        %v635 = vadd.f32 0.0, %v634
        %v636 = vpop.f32.mrf.mxu0
        %v637 = vpop.f32.mrf.mxu0
        %v638 = vadd.f32 0.0, %v637
        %v639 = vpop.f32.mrf.mxu0
        %640 = vmatprep.mubr.bf16.mxu0 0
        %641 = vmatmul.mubr.bf16.gmra.mxu0 %v516
        %v642 = vpop.f32.mrf.mxu0
        %v643 = vadd.f32 0.0, %v642
        %v644 = vpop.f32.mrf.mxu0
        %v645 = vpop.f32.mrf.mxu0
        %v646 = vadd.f32 0.0, %v645
        %v647 = vpop.f32.mrf.mxu0
        %648 = vmatprep.mubr.bf16.mxu0 0
        %649 = vmatmul.mubr.bf16.gmra.mxu0 %v517
        %v650 = vpop.f32.mrf.mxu0
        %v651 = vadd.f32 0.0, %v650
        %v652 = vpop.f32.mrf.mxu0
        %v653 = vpop.f32.mrf.mxu0
        %v654 = vadd.f32 0.0, %v653
        %v655 = vpop.f32.mrf.mxu0
        %656 = vmatprep.mubr.bf16.mxu0 0
        %657 = vmatmul.mubr.bf16.gmra.mxu0 %v518
        %v658 = vpop.f32.mrf.mxu0
        %v659 = vadd.f32 0.0, %v658
        %v660 = vpop.f32.mrf.mxu0
        %v661 = vpop.f32.mrf.mxu0
        %v662 = vadd.f32 0.0, %v661
        %v663 = vpop.f32.mrf.mxu0
        %664 = vmatprep.mubr.bf16.mxu0 0
        %665 = vmatmul.mubr.bf16.gmra.mxu0 %v519
        %v666 = vpop.f32.mrf.mxu0
        %v667 = vadd.f32 0.0, %v666
        %v668 = vpop.f32.mrf.mxu0
        %v669 = vpop.f32.mrf.mxu0
        %v670 = vadd.f32 0.0, %v669
        %v671 = vpop.f32.mrf.mxu0
        %672 = vdwg.mxu0
        %v673 = vadd.f32 %v432, %v611
        %v674 = vadd.f32 %v433, %v614
        %v675 = vadd.f32 %v434, %v619
        %v676 = vadd.f32 %v435, %v622
        %v677 = vadd.f32 %v436, %v627
        %v678 = vadd.f32 %v437, %v630
        %v679 = vadd.f32 %v438, %v635
        %v680 = vadd.f32 %v439, %v638
        %v681 = vadd.f32 %v440, %v643
        %v682 = vadd.f32 %v441, %v646
        %v683 = vadd.f32 %v442, %v651
        %v684 = vadd.f32 %v443, %v654
        %v685 = vadd.f32 %v444, %v659
        %v686 = vadd.f32 %v445, %v662
        %v687 = vadd.f32 %v446, %v667
        %v688 = vadd.f32 %v447, %v670
        %689 = vst [vmem:[#allocation2] sm:$0xff] %v673
        %690 = vst [vmem:[#allocation2 + $0x8] sm:$0xff] %v674
        %691 = vst [vmem:[#allocation2 + $0x10] sm:$0xff] %v675
        %692 = vst [vmem:[#allocation2 + $0x18] sm:$0xff] %v676
        %693 = vst [vmem:[#allocation2 + $0x20] sm:$0xff] %v677
        %694 = vst [vmem:[#allocation2 + $0x28] sm:$0xff] %v678
        %695 = vst [vmem:[#allocation2 + $0x30] sm:$0xff] %v679
        %696 = vst [vmem:[#allocation2 + $0x38] sm:$0xff] %v680
        %697 = vst [vmem:[#allocation2 + $0x40] sm:$0xff] %v681
        %698 = vst [vmem:[#allocation2 + $0x48] sm:$0xff] %v682
        %699 = vst [vmem:[#allocation2 + $0x50] sm:$0xff] %v683
        %700 = vst [vmem:[#allocation2 + $0x58] sm:$0xff] %v684
        %701 = vst [vmem:[#allocation2 + $0x60] sm:$0xff] %v685
        %702 = vst [vmem:[#allocation2 + $0x68] sm:$0xff] %v686
        %703 = vst [vmem:[#allocation2 + $0x70] sm:$0xff] %v687
        %704 = vst [vmem:[#allocation2 + $0x78] sm:$0xff] %v688
        %p705 = scmp.eq.s32.totalorder %s35, 1
        // Predicated region
        $region69: #{tpu_custom_call.1} parent=47 // pred_check
          %p706 = pneg %p705
        $region70: #{tpu_custom_call.1} parent=47 // pred_check_branch
          %708 = sbr.rel (%p706) target = $region72
        $region71: #{tpu_custom_call.1} parent=47 // pred_region
          %v709 = vld [vmem:[#allocation2] sm:$0xff]
          %v710 = vld [vmem:[#allocation2 + $0x8] sm:$0xff]
          %v711 = vld [vmem:[#allocation2 + $0x10] sm:$0xff]
          %v712 = vld [vmem:[#allocation2 + $0x18] sm:$0xff]
          %v713 = vld [vmem:[#allocation2 + $0x20] sm:$0xff]
          %v714 = vld [vmem:[#allocation2 + $0x28] sm:$0xff]
          %v715 = vld [vmem:[#allocation2 + $0x30] sm:$0xff]
          %v716 = vld [vmem:[#allocation2 + $0x38] sm:$0xff]
          %v717 = vld [vmem:[#allocation2 + $0x40] sm:$0xff]
          %v718 = vld [vmem:[#allocation2 + $0x48] sm:$0xff]
          %v719 = vld [vmem:[#allocation2 + $0x50] sm:$0xff]
          %v720 = vld [vmem:[#allocation2 + $0x58] sm:$0xff]
          %v721 = vld [vmem:[#allocation2 + $0x60] sm:$0xff]
          %v722 = vld [vmem:[#allocation2 + $0x68] sm:$0xff]
          %v723 = vld [vmem:[#allocation2 + $0x70] sm:$0xff]
          %v724 = vld [vmem:[#allocation2 + $0x78] sm:$0xff]
          %v725 = vpack.c.bf16 %v710, %v709
          %v726 = vpack.c.bf16 %v712, %v711
          %v727 = vpack.c.bf16 %v714, %v713
          %v728 = vpack.c.bf16 %v716, %v715
          %v729 = vpack.c.bf16 %v718, %v717
          %v730 = vpack.c.bf16 %v720, %v719
          %v731 = vpack.c.bf16 %v722, %v721
          %v732 = vpack.c.bf16 %v724, %v723
          %v733 = vld [vmem:[#allocation8] sm:$0xf]
          %v734 = vld [vmem:[#allocation8 + $0x4] sm:$0xf]
          %v735 = vld [vmem:[#allocation8 + $0x8] sm:$0xf]
          %v736 = vld [vmem:[#allocation8 + $0xc] sm:$0xf]
          %v737 = vld [vmem:[#allocation8 + $0x10] sm:$0xf]
          %v738 = vld [vmem:[#allocation8 + $0x14] sm:$0xf]
          %v739 = vld [vmem:[#allocation8 + $0x18] sm:$0xf]
          %v740 = vld [vmem:[#allocation8 + $0x1c] sm:$0xf]
          %v741 = vld [vmem:[#allocation8 + $0x20] sm:$0xf]
          %v742 = vld [vmem:[#allocation8 + $0x24] sm:$0xf]
          %v743 = vld [vmem:[#allocation8 + $0x28] sm:$0xf]
          %v744 = vld [vmem:[#allocation8 + $0x2c] sm:$0xf]
          %v745 = vld [vmem:[#allocation8 + $0x30] sm:$0xf]
          %v746 = vld [vmem:[#allocation8 + $0x34] sm:$0xf]
          %v747 = vld [vmem:[#allocation8 + $0x38] sm:$0xf]
          %v748 = vld [vmem:[#allocation8 + $0x3c] sm:$0xf]
          %v749 = vld [vmem:[%s3] sm:$0x1]
          %v751 = vlaneseq
          %v752 = vshrl.u32 %v751, 7
          %v753 = vsub.s32 0, %v752
          %v754 = vrot.slane %v749, %v753
          %v772 = vunpack.c.l.b16 %v733
          %v773 = vunpack.c.l.b16 %v734
          %v774 = vunpack.c.l.b16 %v735
          %v775 = vunpack.c.l.b16 %v736
          %v776 = vunpack.c.l.b16 %v737
          %v777 = vunpack.c.l.b16 %v738
          %v778 = vunpack.c.l.b16 %v739
          %v779 = vunpack.c.l.b16 %v740
          %v780 = vunpack.c.l.b16 %v741
          %v781 = vunpack.c.l.b16 %v742
          %v782 = vunpack.c.l.b16 %v743
          %v783 = vunpack.c.l.b16 %v744
          %v784 = vunpack.c.l.b16 %v745
          %v785 = vunpack.c.l.b16 %v746
          %v786 = vunpack.c.l.b16 %v747
          %v787 = vunpack.c.l.b16 %v748
          %v788 = vpack.c.b16 %v773, %v772
          %v789 = vpack.c.b16 %v775, %v774
          %v790 = vpack.c.b16 %v777, %v776
          %v791 = vpack.c.b16 %v779, %v778
          %v792 = vpack.c.b16 %v781, %v780
          %v793 = vpack.c.b16 %v783, %v782
          %v794 = vpack.c.b16 %v785, %v784
          %v795 = vpack.c.b16 %v787, %v786
          %804 = vmatprep.subr.bf16.mxu0 0
          %805 = vmatpush1.bf16.msra.mxu0 %v795
          %806 = vmatprep.subr.bf16.mxu0 0
          %807 = vmatpush1.bf16.msra.mxu0 %v794
          %808 = vmatprep.subr.bf16.mxu0 0
          %809 = vmatpush1.bf16.msra.mxu0 %v793
          %810 = vmatprep.subr.bf16.mxu0 0
          %811 = vmatpush1.bf16.msra.mxu0 %v792
          %812 = vmatprep.subr.bf16.mxu0 0
          %813 = vmatpush1.bf16.msra.mxu0 %v791
          %814 = vmatprep.subr.bf16.mxu0 0
          %815 = vmatpush1.bf16.msra.mxu0 %v790
          %816 = vmatprep.subr.bf16.mxu0 0
          %817 = vmatpush1.bf16.msra.mxu0 %v789
          %818 = vmatprep.subr.bf16.mxu0 0
          %819 = vmatpush1.bf16.msra.mxu0 %v788
          %820 = vmatprep.subr.bf16.mxu0 0
          %821 = vmatpush2.bf16.msra.mxu0 0
          %822 = vmatprep.subr.bf16.mxu0 0
          %823 = vmatpush2.bf16.msra.mxu0 0
          %824 = vmatprep.subr.bf16.mxu0 0
          %825 = vmatpush2.bf16.msra.mxu0 0
          %826 = vmatprep.subr.bf16.mxu0 0
          %827 = vmatpush2.bf16.msra.mxu0 0
          %828 = vmatprep.subr.bf16.mxu0 0
          %829 = vmatpush2.bf16.msra.mxu0 0
          %830 = vmatprep.subr.bf16.mxu0 0
          %831 = vmatpush2.bf16.msra.mxu0 0
          %832 = vmatprep.subr.bf16.mxu0 0
          %833 = vmatpush2.bf16.msra.mxu0 0
          %834 = vmatprep.subr.bf16.mxu0 0
          %835 = vmatpush2.bf16.msra.mxu0 0
          %836 = vmatprep.mubr.bf16.mxu0 0
          %837 = vmatmul.mubr.bf16.gmra.mxu0 %v725
          %v838 = vpop.f32.mrf.mxu0
          %v839 = vadd.f32 %v754, %v838
          %v840 = vpop.f32.mrf.mxu0
          %v841 = vpop.f32.mrf.mxu0
          %v842 = vadd.f32 %v754, %v841
          %v843 = vpop.f32.mrf.mxu0
          %844 = vmatprep.mubr.bf16.mxu0 0
          %845 = vmatmul.mubr.bf16.gmra.mxu0 %v726
          %v846 = vpop.f32.mrf.mxu0
          %v847 = vadd.f32 %v754, %v846
          %v848 = vpop.f32.mrf.mxu0
          %v849 = vpop.f32.mrf.mxu0
          %v850 = vadd.f32 %v754, %v849
          %v851 = vpop.f32.mrf.mxu0
          %852 = vmatprep.mubr.bf16.mxu0 0
          %853 = vmatmul.mubr.bf16.gmra.mxu0 %v727
          %v854 = vpop.f32.mrf.mxu0
          %v855 = vadd.f32 %v754, %v854
          %v856 = vpop.f32.mrf.mxu0
          %v857 = vpop.f32.mrf.mxu0
          %v858 = vadd.f32 %v754, %v857
          %v859 = vpop.f32.mrf.mxu0
          %860 = vmatprep.mubr.bf16.mxu0 0
          %861 = vmatmul.mubr.bf16.gmra.mxu0 %v728
          %v862 = vpop.f32.mrf.mxu0
          %v863 = vadd.f32 %v754, %v862
          %v864 = vpop.f32.mrf.mxu0
          %v865 = vpop.f32.mrf.mxu0
          %v866 = vadd.f32 %v754, %v865
          %v867 = vpop.f32.mrf.mxu0
          %868 = vmatprep.mubr.bf16.mxu0 0
          %869 = vmatmul.mubr.bf16.gmra.mxu0 %v729
          %v870 = vpop.f32.mrf.mxu0
          %v871 = vadd.f32 %v754, %v870
          %v872 = vpop.f32.mrf.mxu0
          %v873 = vpop.f32.mrf.mxu0
          %v874 = vadd.f32 %v754, %v873
          %v875 = vpop.f32.mrf.mxu0
          %876 = vmatprep.mubr.bf16.mxu0 0
          %877 = vmatmul.mubr.bf16.gmra.mxu0 %v730
          %v878 = vpop.f32.mrf.mxu0
          %v879 = vadd.f32 %v754, %v878
          %v880 = vpop.f32.mrf.mxu0
          %v881 = vpop.f32.mrf.mxu0
          %v882 = vadd.f32 %v754, %v881
          %v883 = vpop.f32.mrf.mxu0
          %884 = vmatprep.mubr.bf16.mxu0 0
          %885 = vmatmul.mubr.bf16.gmra.mxu0 %v731
          %v886 = vpop.f32.mrf.mxu0
          %v887 = vadd.f32 %v754, %v886
          %v888 = vpop.f32.mrf.mxu0
          %v889 = vpop.f32.mrf.mxu0
          %v890 = vadd.f32 %v754, %v889
          %v891 = vpop.f32.mrf.mxu0
          %892 = vmatprep.mubr.bf16.mxu0 0
          %893 = vmatmul.mubr.bf16.gmra.mxu0 %v732
          %v894 = vpop.f32.mrf.mxu0
          %v895 = vadd.f32 %v754, %v894
          %v896 = vpop.f32.mrf.mxu0
          %v897 = vpop.f32.mrf.mxu0
          %v898 = vadd.f32 %v754, %v897
          %v899 = vpop.f32.mrf.mxu0
          %900 = vdwg.mxu0
          %v901 = vmax.f32 %v839, 0.0
          %v902 = vmax.f32 %v842, 0.0
          %v903 = vmax.f32 %v847, 0.0
          %v904 = vmax.f32 %v850, 0.0
          %v905 = vmax.f32 %v855, 0.0
          %v906 = vmax.f32 %v858, 0.0
          %v907 = vmax.f32 %v863, 0.0
          %v908 = vmax.f32 %v866, 0.0
          %v909 = vmax.f32 %v871, 0.0
          %v910 = vmax.f32 %v874, 0.0
          %v911 = vmax.f32 %v879, 0.0
          %v912 = vmax.f32 %v882, 0.0
          %v913 = vmax.f32 %v887, 0.0
          %v914 = vmax.f32 %v890, 0.0
          %v915 = vmax.f32 %v895, 0.0
          %v916 = vmax.f32 %v898, 0.0
          %v917 = vld [vmem:[%s366] sm:$0xf]
          %v918 = vld [vmem:[%s366 + $0x4] sm:$0xf]
          %v919 = vld [vmem:[%s366 + $0x8] sm:$0xf]
          %v920 = vld [vmem:[%s366 + $0xc] sm:$0xf]
          %v921 = vld [vmem:[%s366 + $0x10] sm:$0xf]
          %v922 = vld [vmem:[%s366 + $0x14] sm:$0xf]
          %v923 = vld [vmem:[%s366 + $0x18] sm:$0xf]
          %v924 = vld [vmem:[%s366 + $0x1c] sm:$0xf]
          %v925 = vld [vmem:[%s366 + $0x20] sm:$0xf]
          %v926 = vld [vmem:[%s366 + $0x24] sm:$0xf]
          %v927 = vld [vmem:[%s366 + $0x28] sm:$0xf]
          %v928 = vld [vmem:[%s366 + $0x2c] sm:$0xf]
          %v929 = vld [vmem:[%s366 + $0x30] sm:$0xf]
          %v930 = vld [vmem:[%s366 + $0x34] sm:$0xf]
          %v931 = vld [vmem:[%s366 + $0x38] sm:$0xf]
          %v932 = vld [vmem:[%s366 + $0x3c] sm:$0xf]
          %v933 = vunpack.c.l.bf16 %v917
          %v934 = vunpack.c.l.bf16 %v918
          %v935 = vunpack.c.l.bf16 %v919
          %v936 = vunpack.c.l.bf16 %v920
          %v937 = vunpack.c.l.bf16 %v921
          %v938 = vunpack.c.l.bf16 %v922
          %v939 = vunpack.c.l.bf16 %v923
          %v940 = vunpack.c.l.bf16 %v924
          %v941 = vunpack.c.l.bf16 %v925
          %v942 = vunpack.c.l.bf16 %v926
          %v943 = vunpack.c.l.bf16 %v927
          %v944 = vunpack.c.l.bf16 %v928
          %v945 = vunpack.c.l.bf16 %v929
          %v946 = vunpack.c.l.bf16 %v930
          %v947 = vunpack.c.l.bf16 %v931
          %v948 = vunpack.c.l.bf16 %v932
          %v949 = vmul.f32 %v901, %v933
          %v950 = vmul.f32 %v902, %v934
          %v951 = vmul.f32 %v903, %v935
          %v952 = vmul.f32 %v904, %v936
          %v953 = vmul.f32 %v905, %v937
          %v954 = vmul.f32 %v906, %v938
          %v955 = vmul.f32 %v907, %v939
          %v956 = vmul.f32 %v908, %v940
          %v957 = vmul.f32 %v909, %v941
          %v958 = vmul.f32 %v910, %v942
          %v959 = vmul.f32 %v911, %v943
          %v960 = vmul.f32 %v912, %v944
          %v961 = vmul.f32 %v913, %v945
          %v962 = vmul.f32 %v914, %v946
          %v963 = vmul.f32 %v915, %v947
          %v964 = vmul.f32 %v916, %v948
          %v965 = vmul.f32 %v949, 1.4285715
          %v966 = vmul.f32 %v950, 1.4285715
          %v967 = vmul.f32 %v951, 1.4285715
          %v968 = vmul.f32 %v952, 1.4285715
          %v969 = vmul.f32 %v953, 1.4285715
          %v970 = vmul.f32 %v954, 1.4285715
          %v971 = vmul.f32 %v955, 1.4285715
          %v972 = vmul.f32 %v956, 1.4285715
          %v973 = vmul.f32 %v957, 1.4285715
          %v974 = vmul.f32 %v958, 1.4285715
          %v975 = vmul.f32 %v959, 1.4285715
          %v976 = vmul.f32 %v960, 1.4285715
          %v977 = vmul.f32 %v961, 1.4285715
          %v978 = vmul.f32 %v962, 1.4285715
          %v979 = vmul.f32 %v963, 1.4285715
          %v980 = vmul.f32 %v964, 1.4285715
          %981 = vadd.xlane.f32.xlu0 %v965
          %v982 = vpop.xlane.xlu0 %981
          %983 = vadd.xlane.f32.xlu0 %v966
          %v984 = vpop.xlane.xlu0 %983
          %985 = vadd.xlane.f32.xlu0 %v967
          %v986 = vpop.xlane.xlu0 %985
          %987 = vadd.xlane.f32.xlu0 %v968
          %v988 = vpop.xlane.xlu0 %987
          %989 = vadd.xlane.f32.xlu0 %v969
          %v990 = vpop.xlane.xlu0 %989
          %991 = vadd.xlane.f32.xlu0 %v970
          %v992 = vpop.xlane.xlu0 %991
          %993 = vadd.xlane.f32.xlu0 %v971
          %v994 = vpop.xlane.xlu0 %993
          %995 = vadd.xlane.f32.xlu0 %v972
          %v996 = vpop.xlane.xlu0 %995
          %997 = vadd.xlane.f32.xlu0 %v973
          %v998 = vpop.xlane.xlu0 %997
          %999 = vadd.xlane.f32.xlu0 %v974
          %v1000 = vpop.xlane.xlu0 %999
          %1001 = vadd.xlane.f32.xlu0 %v975
          %v1002 = vpop.xlane.xlu0 %1001
          %1003 = vadd.xlane.f32.xlu0 %v976
          %v1004 = vpop.xlane.xlu0 %1003
          %1005 = vadd.xlane.f32.xlu0 %v977
          %v1006 = vpop.xlane.xlu0 %1005
          %1007 = vadd.xlane.f32.xlu0 %v978
          %v1008 = vpop.xlane.xlu0 %1007
          %1009 = vadd.xlane.f32.xlu0 %v979
          %v1010 = vpop.xlane.xlu0 %1009
          %1011 = vadd.xlane.f32.xlu0 %v980
          %v1012 = vpop.xlane.xlu0 %1011
          %v1013 = vmul.f32 %v965, %v965
          %v1014 = vmul.f32 %v966, %v966
          %v1015 = vmul.f32 %v967, %v967
          %v1016 = vmul.f32 %v968, %v968
          %v1017 = vmul.f32 %v969, %v969
          %v1018 = vmul.f32 %v970, %v970
          %v1019 = vmul.f32 %v971, %v971
          %v1020 = vmul.f32 %v972, %v972
          %v1021 = vmul.f32 %v973, %v973
          %v1022 = vmul.f32 %v974, %v974
          %v1023 = vmul.f32 %v975, %v975
          %v1024 = vmul.f32 %v976, %v976
          %v1025 = vmul.f32 %v977, %v977
          %v1026 = vmul.f32 %v978, %v978
          %v1027 = vmul.f32 %v979, %v979
          %v1028 = vmul.f32 %v980, %v980
          %1029 = vadd.xlane.f32.xlu0 %v1013
          %v1030 = vpop.xlane.xlu0 %1029
          %1031 = vadd.xlane.f32.xlu0 %v1014
          %v1032 = vpop.xlane.xlu0 %1031
          %1033 = vadd.xlane.f32.xlu0 %v1015
          %v1034 = vpop.xlane.xlu0 %1033
          %1035 = vadd.xlane.f32.xlu0 %v1016
          %v1036 = vpop.xlane.xlu0 %1035
          %1037 = vadd.xlane.f32.xlu0 %v1017
          %v1038 = vpop.xlane.xlu0 %1037
          %1039 = vadd.xlane.f32.xlu0 %v1018
          %v1040 = vpop.xlane.xlu0 %1039
          %1041 = vadd.xlane.f32.xlu0 %v1019
          %v1042 = vpop.xlane.xlu0 %1041
          %1043 = vadd.xlane.f32.xlu0 %v1020
          %v1044 = vpop.xlane.xlu0 %1043
          %1045 = vadd.xlane.f32.xlu0 %v1021
          %v1046 = vpop.xlane.xlu0 %1045
          %1047 = vadd.xlane.f32.xlu0 %v1022
          %v1048 = vpop.xlane.xlu0 %1047
          %1049 = vadd.xlane.f32.xlu0 %v1023
          %v1050 = vpop.xlane.xlu0 %1049
          %1051 = vadd.xlane.f32.xlu0 %v1024
          %v1052 = vpop.xlane.xlu0 %1051
          %1053 = vadd.xlane.f32.xlu0 %v1025
          %v1054 = vpop.xlane.xlu0 %1053
          %1055 = vadd.xlane.f32.xlu0 %v1026
          %v1056 = vpop.xlane.xlu0 %1055
          %1057 = vadd.xlane.f32.xlu0 %v1027
          %v1058 = vpop.xlane.xlu0 %1057
          %1059 = vadd.xlane.f32.xlu0 %v1028
          %v1060 = vpop.xlane.xlu0 %1059
          %v1061 = vmul.f32 %v982, 0.03125
          %v1062 = vmul.f32 %v984, 0.03125
          %v1063 = vmul.f32 %v986, 0.03125
          %v1064 = vmul.f32 %v988, 0.03125
          %v1065 = vmul.f32 %v990, 0.03125
          %v1066 = vmul.f32 %v992, 0.03125
          %v1067 = vmul.f32 %v994, 0.03125
          %v1068 = vmul.f32 %v996, 0.03125
          %v1069 = vmul.f32 %v998, 0.03125
          %v1070 = vmul.f32 %v1000, 0.03125
          %v1071 = vmul.f32 %v1002, 0.03125
          %v1072 = vmul.f32 %v1004, 0.03125
          %v1073 = vmul.f32 %v1006, 0.03125
          %v1074 = vmul.f32 %v1008, 0.03125
          %v1075 = vmul.f32 %v1010, 0.03125
          %v1076 = vmul.f32 %v1012, 0.03125
          %v1077 = vmul.f32 %v1030, 0.03125
          %v1078 = vmul.f32 %v1032, 0.03125
          %v1079 = vmul.f32 %v1034, 0.03125
          %v1080 = vmul.f32 %v1036, 0.03125
          %v1081 = vmul.f32 %v1038, 0.03125
          %v1082 = vmul.f32 %v1040, 0.03125
          %v1083 = vmul.f32 %v1042, 0.03125
          %v1084 = vmul.f32 %v1044, 0.03125
          %v1085 = vmul.f32 %v1046, 0.03125
          %v1086 = vmul.f32 %v1048, 0.03125
          %v1087 = vmul.f32 %v1050, 0.03125
          %v1088 = vmul.f32 %v1052, 0.03125
          %v1089 = vmul.f32 %v1054, 0.03125
          %v1090 = vmul.f32 %v1056, 0.03125
          %v1091 = vmul.f32 %v1058, 0.03125
          %v1092 = vmul.f32 %v1060, 0.03125
          %v1093 = vmul.f32 %v1061, %v1061
          %v1094 = vmul.f32 %v1062, %v1062
          %v1095 = vmul.f32 %v1063, %v1063
          %v1096 = vmul.f32 %v1064, %v1064
          %v1097 = vmul.f32 %v1065, %v1065
          %v1098 = vmul.f32 %v1066, %v1066
          %v1099 = vmul.f32 %v1067, %v1067
          %v1100 = vmul.f32 %v1068, %v1068
          %v1101 = vmul.f32 %v1069, %v1069
          %v1102 = vmul.f32 %v1070, %v1070
          %v1103 = vmul.f32 %v1071, %v1071
          %v1104 = vmul.f32 %v1072, %v1072
          %v1105 = vmul.f32 %v1073, %v1073
          %v1106 = vmul.f32 %v1074, %v1074
          %v1107 = vmul.f32 %v1075, %v1075
          %v1108 = vmul.f32 %v1076, %v1076
          %v1109 = vsub.f32 %v1077, %v1093
          %v1110 = vsub.f32 %v1078, %v1094
          %v1111 = vsub.f32 %v1079, %v1095
          %v1112 = vsub.f32 %v1080, %v1096
          %v1113 = vsub.f32 %v1081, %v1097
          %v1114 = vsub.f32 %v1082, %v1098
          %v1115 = vsub.f32 %v1083, %v1099
          %v1116 = vsub.f32 %v1084, %v1100
          %v1117 = vsub.f32 %v1085, %v1101
          %v1118 = vsub.f32 %v1086, %v1102
          %v1119 = vsub.f32 %v1087, %v1103
          %v1120 = vsub.f32 %v1088, %v1104
          %v1121 = vsub.f32 %v1089, %v1105
          %v1122 = vsub.f32 %v1090, %v1106
          %v1123 = vsub.f32 %v1091, %v1107
          %v1124 = vsub.f32 %v1092, %v1108
          %v1125 = vsub.f32 %v965, %v1061
          %v1126 = vsub.f32 %v966, %v1062
          %v1127 = vsub.f32 %v967, %v1063
          %v1128 = vsub.f32 %v968, %v1064
          %v1129 = vsub.f32 %v969, %v1065
          %v1130 = vsub.f32 %v970, %v1066
          %v1131 = vsub.f32 %v971, %v1067
          %v1132 = vsub.f32 %v972, %v1068
          %v1133 = vsub.f32 %v973, %v1069
          %v1134 = vsub.f32 %v974, %v1070
          %v1135 = vsub.f32 %v975, %v1071
          %v1136 = vsub.f32 %v976, %v1072
          %v1137 = vsub.f32 %v977, %v1073
          %v1138 = vsub.f32 %v978, %v1074
          %v1139 = vsub.f32 %v979, %v1075
          %v1140 = vsub.f32 %v980, %v1076
          %v1141 = vadd.f32 %v1109, 1e-05
          %v1142 = vadd.f32 %v1110, 1e-05
          %v1143 = vadd.f32 %v1111, 1e-05
          %v1144 = vadd.f32 %v1112, 1e-05
          %v1145 = vadd.f32 %v1113, 1e-05
          %v1146 = vadd.f32 %v1114, 1e-05
          %v1147 = vadd.f32 %v1115, 1e-05
          %v1148 = vadd.f32 %v1116, 1e-05
          %v1149 = vadd.f32 %v1117, 1e-05
          %v1150 = vadd.f32 %v1118, 1e-05
          %v1151 = vadd.f32 %v1119, 1e-05
          %v1152 = vadd.f32 %v1120, 1e-05
          %v1153 = vadd.f32 %v1121, 1e-05
          %v1154 = vadd.f32 %v1122, 1e-05
          %v1155 = vadd.f32 %v1123, 1e-05
          %v1156 = vadd.f32 %v1124, 1e-05
          %v1157 = vrsqrt.pop %v1141
          %v1158 = vrsqrt.pop %v1142
          %v1159 = vrsqrt.pop %v1143
          %v1160 = vrsqrt.pop %v1144
          %v1161 = vrsqrt.pop %v1145
          %v1162 = vrsqrt.pop %v1146
          %v1163 = vrsqrt.pop %v1147
          %v1164 = vrsqrt.pop %v1148
          %v1165 = vrsqrt.pop %v1149
          %v1166 = vrsqrt.pop %v1150
          %v1167 = vrsqrt.pop %v1151
          %v1168 = vrsqrt.pop %v1152
          %v1169 = vrsqrt.pop %v1153
          %v1170 = vrsqrt.pop %v1154
          %v1171 = vrsqrt.pop %v1155
          %v1172 = vrsqrt.pop %v1156
          %v1173 = vmul.f32 %v1125, %v1157
          %v1174 = vmul.f32 %v1126, %v1158
          %v1175 = vmul.f32 %v1127, %v1159
          %v1176 = vmul.f32 %v1128, %v1160
          %v1177 = vmul.f32 %v1129, %v1161
          %v1178 = vmul.f32 %v1130, %v1162
          %v1179 = vmul.f32 %v1131, %v1163
          %v1180 = vmul.f32 %v1132, %v1164
          %v1181 = vmul.f32 %v1133, %v1165
          %v1182 = vmul.f32 %v1134, %v1166
          %v1183 = vmul.f32 %v1135, %v1167
          %v1184 = vmul.f32 %v1136, %v1168
          %v1185 = vmul.f32 %v1137, %v1169
          %v1186 = vmul.f32 %v1138, %v1170
          %v1187 = vmul.f32 %v1139, %v1171
          %v1188 = vmul.f32 %v1140, %v1172
          %v1189 = vld [vmem:[%s4] sm:$0x1]
          %v1191 = vlaneseq
          %v1192 = vshrl.u32 %v1191, 7
          %v1193 = vsub.s32 0, %v1192
          %v1194 = vrot.slane %v1189, %v1193
          %v1196 = vmul.f32 %v1173, %v1194
          %v1197 = vmul.f32 %v1174, %v1194
          %v1198 = vmul.f32 %v1175, %v1194
          %v1199 = vmul.f32 %v1176, %v1194
          %v1200 = vmul.f32 %v1177, %v1194
          %v1201 = vmul.f32 %v1178, %v1194
          %v1202 = vmul.f32 %v1179, %v1194
          %v1203 = vmul.f32 %v1180, %v1194
          %v1204 = vmul.f32 %v1181, %v1194
          %v1205 = vmul.f32 %v1182, %v1194
          %v1206 = vmul.f32 %v1183, %v1194
          %v1207 = vmul.f32 %v1184, %v1194
          %v1208 = vmul.f32 %v1185, %v1194
          %v1209 = vmul.f32 %v1186, %v1194
          %v1210 = vmul.f32 %v1187, %v1194
          %v1211 = vmul.f32 %v1188, %v1194
          %v1212 = vld [vmem:[%s5] sm:$0x1]
          %v1214 = vlaneseq
          %v1215 = vshrl.u32 %v1214, 7
          %v1216 = vsub.s32 0, %v1215
          %v1217 = vrot.slane %v1212, %v1216
          %v1219 = vadd.f32 %v1196, %v1217
          %v1220 = vadd.f32 %v1197, %v1217
          %v1221 = vadd.f32 %v1198, %v1217
          %v1222 = vadd.f32 %v1199, %v1217
          %v1223 = vadd.f32 %v1200, %v1217
          %v1224 = vadd.f32 %v1201, %v1217
          %v1225 = vadd.f32 %v1202, %v1217
          %v1226 = vadd.f32 %v1203, %v1217
          %v1227 = vadd.f32 %v1204, %v1217
          %v1228 = vadd.f32 %v1205, %v1217
          %v1229 = vadd.f32 %v1206, %v1217
          %v1230 = vadd.f32 %v1207, %v1217
          %v1231 = vadd.f32 %v1208, %v1217
          %v1232 = vadd.f32 %v1209, %v1217
          %v1233 = vadd.f32 %v1210, %v1217
          %v1234 = vadd.f32 %v1211, %v1217
          %v1235 = vpack.c.bf16 %v1220, %v1219
          %v1236 = vpack.c.bf16 %v1222, %v1221
          %v1237 = vpack.c.bf16 %v1224, %v1223
          %v1238 = vpack.c.bf16 %v1226, %v1225
          %v1239 = vpack.c.bf16 %v1228, %v1227
          %v1240 = vpack.c.bf16 %v1230, %v1229
          %v1241 = vpack.c.bf16 %v1232, %v1231
          %v1242 = vpack.c.bf16 %v1234, %v1233
          %v1251 = vunpack.c.l.b16 %v1235
          %v1252 = vunpack.c.h.b16 %v1235
          %v1253 = vunpack.c.l.b16 %v1236
          %v1254 = vunpack.c.h.b16 %v1236
          %v1255 = vunpack.c.l.b16 %v1237
          %v1256 = vunpack.c.h.b16 %v1237
          %v1257 = vunpack.c.l.b16 %v1238
          %v1258 = vunpack.c.h.b16 %v1238
          %v1259 = vunpack.c.l.b16 %v1239
          %v1260 = vunpack.c.h.b16 %v1239
          %v1261 = vunpack.c.l.b16 %v1240
          %v1262 = vunpack.c.h.b16 %v1240
          %v1263 = vunpack.c.l.b16 %v1241
          %v1264 = vunpack.c.h.b16 %v1241
          %v1265 = vunpack.c.l.b16 %v1242
          %v1266 = vunpack.c.h.b16 %v1242
          %v1267 = vpack.c.b16 %v1251, %v1251
          %v1268 = vpack.c.b16 %v1252, %v1252
          %v1269 = vpack.c.b16 %v1253, %v1253
          %v1270 = vpack.c.b16 %v1254, %v1254
          %v1271 = vpack.c.b16 %v1255, %v1255
          %v1272 = vpack.c.b16 %v1256, %v1256
          %v1273 = vpack.c.b16 %v1257, %v1257
          %v1274 = vpack.c.b16 %v1258, %v1258
          %v1275 = vpack.c.b16 %v1259, %v1259
          %v1276 = vpack.c.b16 %v1260, %v1260
          %v1277 = vpack.c.b16 %v1261, %v1261
          %v1278 = vpack.c.b16 %v1262, %v1262
          %v1279 = vpack.c.b16 %v1263, %v1263
          %v1280 = vpack.c.b16 %v1264, %v1264
          %v1281 = vpack.c.b16 %v1265, %v1265
          %v1282 = vpack.c.b16 %v1266, %v1266
          %1299 = vst [vmem:[%s406] sm:$0xf] %v1267
          %1300 = vst [vmem:[%s406 + $0x4] sm:$0xf] %v1268
          %1301 = vst [vmem:[%s406 + $0x8] sm:$0xf] %v1269
          %1302 = vst [vmem:[%s406 + $0xc] sm:$0xf] %v1270
          %1303 = vst [vmem:[%s406 + $0x10] sm:$0xf] %v1271
          %1304 = vst [vmem:[%s406 + $0x14] sm:$0xf] %v1272
          %1305 = vst [vmem:[%s406 + $0x18] sm:$0xf] %v1273
          %1306 = vst [vmem:[%s406 + $0x1c] sm:$0xf] %v1274
          %1307 = vst [vmem:[%s406 + $0x20] sm:$0xf] %v1275
          %1308 = vst [vmem:[%s406 + $0x24] sm:$0xf] %v1276
          %1309 = vst [vmem:[%s406 + $0x28] sm:$0xf] %v1277
          %1310 = vst [vmem:[%s406 + $0x2c] sm:$0xf] %v1278
          %1311 = vst [vmem:[%s406 + $0x30] sm:$0xf] %v1279
          %1312 = vst [vmem:[%s406 + $0x34] sm:$0xf] %v1280
          %1313 = vst [vmem:[%s406 + $0x38] sm:$0xf] %v1281
          %1314 = vst [vmem:[%s406 + $0x3c] sm:$0xf] %v1282
        $region72: #{tpu_custom_call.1} parent=47 // pred_fallthru
          _
        %s1315 = sand.u32 %s214, 1
        %s1316 = scalar_lea.sflag [#allocation5], %s1315
        %s1317 = sand.u32 %s214, 1
        %s1318 = smul.addr %s1317, 64
        %s1319 = scalar_lea.vmem [#allocation11], %s1318
        // Predicated region
        $region73: #{tpu_custom_call.1} parent=47 // pred_check
          %p1320 = pneg %p224
        $region74: #{tpu_custom_call.1} parent=47 // pred_check_branch
          %1322 = sbr.rel (%p1320) target = $region76
        $region75: #{tpu_custom_call.1} parent=47 // pred_region
          %s1323 = smul.u32 16, %s34
          %s1325 = ssub.s32 1024, 1024
          %1326 = vsyncadd %s1316, %s1325
          %s1327 = smul.addr %s1323, 64
          %s1328 = scalar_lea.hbm %s7, %s1327
          %s1329 = sshll.u32 %s1319, 4
          %s1330 = int_to_ptr.vmem [resolvable:$true] %s1329
          %1335 = dma.vmem_to_hbm [thread:$0]  %s1330, 1024, %s1328, %s1316, 64, 64, 4
        $region76: #{tpu_custom_call.1} parent=47 // pred_fallthru
          _
      $region48: #{tpu_custom_call.1} parent=5 // pred_fallthru
        _
      %p1336 = scmp.le.s32.totalorder 2, %s25
      // Predicated region
      $region77: #{tpu_custom_call.1} parent=5 // pred_check
        %p1337 = pneg %p1336
      $region78: #{tpu_custom_call.1} parent=5 // pred_check_branch
        %1339 = sbr.rel (%p1337) target = $region80
      $region79: #{tpu_custom_call.1} parent=5 // pred_region
        %s1340 = ssub.s32 %s25, 2
        // Predicated region
        $region81: #{tpu_custom_call.1} parent=79 // pred_check
          %p1341 = pneg %p230
        $region82: #{tpu_custom_call.1} parent=79 // pred_check_branch
          %1343 = sbr.rel (%p1341) target = $region84
        $region83: #{tpu_custom_call.1} parent=79 // pred_region
          %s1344 = sand.u32 %s215, 1
          %s1345 = scalar_lea.sflag [#allocation5], %s1344
          %s1346 = sand.u32 %s215, 1
          %s1347 = smul.addr %s1346, 64
          %s1348 = scalar_lea.vmem [#allocation11], %s1347
          %1349 = dma.done %s1345, 1024
        $region84: #{tpu_custom_call.1} parent=79 // pred_fallthru
          _
      $region80: #{tpu_custom_call.1} parent=5 // pred_fallthru
        _
    $region6: #{tpu_custom_call.1} parent=1 // loop_footer
      %s29 = sadd.s32 1, %s25
    $region7: #{tpu_custom_call.1} parent=1 // loop_footer_branch
      %24 = sbr.rel target = $region3
    $region8: #{tpu_custom_call.1} parent=1 // loop_exit
      _
    %1350 = vsyncpa [#allocation4], 1
    %s1351 = scalar_lea.sflag [#allocation4], 1
    %1352 = vsyncpa %s1351, 1
    %1353 = vsyncpa [#allocation7], 1
    %s1354 = scalar_lea.sflag [#allocation7], 1
    %1355 = vsyncpa %s1354, 1
    %1356 = vsyncpa [#allocation10], 1
    %s1357 = scalar_lea.sflag [#allocation10], 1
    %1358 = vsyncpa %s1357, 1
    %1359 = vsyncpa [#allocation5], 1
    %s1360 = scalar_lea.sflag [#allocation5], 1
    %1361 = vsyncpa %s1360, 1

</llo_original>
